<compile_context>
chip_gen: v6e
topology: v6e:2x2x1
jax: 0.10.0
libtpu: 0.0.40
codegen_flags: <defaults>
</compile_context>

<pallas_src>
from functools import partial

import numpy as np
import jax
import jax.numpy as jnp
from jax import lax
from jax.experimental import pallas as pl
from jax.experimental.pallas import tpu as pltpu


# ----------------------------------------------------------------------------
# Pallas kernel: one invocation, fully-unrolled in-kernel layer loop.
# ----------------------------------------------------------------------------
def qcbm_kernel(s_ref, w_ref, probs_ref):
    """s_ref:     (2B, D)  f32, stacked [re-rows ; im-rows] of the state.
       w_ref:     (L, D, 2D) bf16, per layer [real(U.T) | imag(U.T)].
       probs_ref: (B, D)   f32, output probabilities."""
    B, D = probs_ref.shape
    L = w_ref.shape[0]

    def layer(l, s):
        # One complex matmul per layer, expressed as a single real matmul:
        #   [sr; si] @ [ur | ui]  gives all four partial products at once.
        w = w_ref[l].astype(jnp.float32)                        # (D, 2D)
        p = jnp.dot(s, w, preferred_element_type=jnp.float32)   # (2B, 2D)
        pr = p[:, :D]                 # [sr@ur ; si@ur]
        pi = p[:, D:]                 # [sr@ui ; si@ui]
        nr = pr[:B, :] - pi[B:, :]    # real(new state)
        ni = pi[:B, :] + pr[B:, :]    # imag(new state)
        return jnp.concatenate([nr, ni], axis=0)                # (2B, D)

    s = lax.fori_loop(0, L, layer, s_ref[...], unroll=True)

    # probs = x[0]**2 + x[1]**2 after the final layer
    sr = s[:B, :]
    si = s[B:, :]
    probs_ref[...] = sr * sr + si * si


@jax.jit
def qcbm_forward(x, w_stack):
    """x: (2, B, D) f32 state planes; w_stack: (L, D, 2D) bf16 layer weights."""
    _, B, D = x.shape
    L = w_stack.shape[0]
    s0 = x.reshape(2 * B, D)          # [re rows ; im rows]
    return pl.pallas_call(
        qcbm_kernel,
        out_shape=jax.ShapeDtypeStruct((B, D), jnp.float32),
        grid=(1,),
        in_specs=[
            pl.BlockSpec((2 * B, D), lambda i: (0, 0)),
            pl.BlockSpec((L, D, 2 * D), lambda i: (0, 0, 0)),
        ],
        out_specs=pl.BlockSpec((B, D), lambda i: (0, 0)),
        compiler_params=pltpu.CompilerParams(
            dimension_semantics=("arbitrary",)),
    )(s0, w_stack)


# ----------------------------------------------------------------------------
# Glue: deterministic parameter init and layer-unitary construction (numpy).
# ----------------------------------------------------------------------------
def _rx(theta):
    c, s = np.cos(theta / 2.0), np.sin(theta / 2.0)
    return np.array([[c, -1j * s], [-1j * s, c]], dtype=np.complex64)


def _ry(theta):
    c, s = np.cos(theta / 2.0), np.sin(theta / 2.0)
    return np.array([[c, -s], [s, c]], dtype=np.complex64)


def _parallel_gate(single_qubit_gates):
    u = np.array([[1.0]], dtype=np.complex64)
    for g in single_qubit_gates:          # qubit 0 = most-significant bit
        u = np.kron(u, g)
    return u


def _cnot_ring(n_qubit):
    d = 2 ** n_qubit
    u = np.eye(d, dtype=np.complex64)
    for c in range(n_qubit):
        t = (c + 1) % n_qubit
        perm = np.zeros((d, d), dtype=np.complex64)
        for b in range(d):
            bit_c = (b >> (n_qubit - 1 - c)) & 1
            nb = b ^ (bit_c << (n_qubit - 1 - t))
            perm[nb, b] = 1.0
        u = perm @ u
    return u


def build_layer_unitaries(n_qubit, k, key):
    """Returns:
       w_kernel: (L, D, 2D) bf16   — per layer [real(U.T) | imag(U.T)]
       u_ref:    (L, 2, D, D) f32  — same bf16-rounded values, for the reference
    """
    angles_needed = 3 + k                 # 3 prep rotation layers + k RY layers
    angles = jax.random.uniform(
        key, (angles_needed, n_qubit), minval=0.0, maxval=2.0 * np.pi)
    angles = np.asarray(angles, dtype=np.float64)

    unitaries = []
    # preparation layer: RX, RY, RX
    unitaries.append(_parallel_gate([_rx(a) for a in angles[0]]))
    unitaries.append(_parallel_gate([_ry(a) for a in angles[1]]))
    unitaries.append(_parallel_gate([_rx(a) for a in angles[2]]))
    # k × [Entangle, ParallelRY]
    ent = _cnot_ring(n_qubit)
    for j in range(k):
        unitaries.append(ent)
        unitaries.append(_parallel_gate([_ry(a) for a in angles[3 + j]]))

    re_im = np.stack(
        [np.stack([np.real(u.T), np.imag(u.T)], axis=0) for u in unitaries],
        axis=0).astype(np.float32)                      # (L, 2, D, D) f32

    u_bf = jnp.asarray(re_im).astype(jnp.bfloat16)      # round weights to bf16
    w_kernel = jnp.concatenate([u_bf[:, 0], u_bf[:, 1]], axis=-1)  # (L, D, 2D)
    u_ref = u_bf.astype(jnp.float32)                    # (L, 2, D, D) f32
    return w_kernel, u_ref


def reference_forward(x, u_stack):
    """Plain-JAX reference of the same math (for verification)."""
    sr, si = x[0], x[1]
    for l in range(u_stack.shape[0]):
        ur, ui = u_stack[l, 0], u_stack[l, 1]
        nr = sr @ ur - si @ ui
        ni = sr @ ui + si @ ur
        sr, si = nr, ni
    return sr ** 2 + si ** 2


# ----------------------------------------------------------------------------
if __name__ == "__main__":
    n_qubit = 8          # D = 2**8 = 256 state dimension
    k = 2                # entangle/RY blocks  ->  L = 3 + 2*k = 7 layers
    B = 2                # batch of input states
    D = 2 ** n_qubit

    key = jax.random.PRNGKey(0)
    k_state, k_params = jax.random.split(key)

    # deterministic input: random normalized complex states, split into re/im
    raw = jax.random.normal(k_state, (2, B, D), dtype=jnp.float32)
    norm = jnp.sqrt(jnp.sum(raw[0] ** 2 + raw[1] ** 2, axis=-1, keepdims=True))
    x = raw / norm[None, :, :]                                   # (2, B, D)

    w_stack, u_ref = build_layer_unitaries(n_qubit, k, k_params)

    probs = qcbm_forward(x, w_stack)
    probs = jax.block_until_ready(probs)

    expected = jax.block_until_ready(reference_forward(x, u_ref))
    np.testing.assert_allclose(np.asarray(probs), np.asarray(expected),
                               rtol=1e-3, atol=1e-5)

    print("KERNEL_OK")
</pallas_src>

<mosaic_0001>
module attributes {stable_mosaic.version = 11 : i64} {
  func.func @qcbm_kernel(%arg0: i32, %arg1: memref<4x256xf32, #tpu.memory_space<vmem>>, %arg2: memref<7x256x512xbf16, #tpu.memory_space<vmem>>, %arg3: memref<2x256xf32, #tpu.memory_space<vmem>>) attributes {dimension_semantics = [#tpu.dimension_semantics<arbitrary>], iteration_bounds = array<i64: 1>, scalar_prefetch = 0 : i64, scratch_operands = 0 : i64, tpu.core_type = #tpu.core_type<tc>, window_params = [{pipeline_mode = #tpu.pipeline_mode<synchronous>, transform_indices = @transform_0, window_bounds = array<i64: 4, 256>}, {pipeline_mode = #tpu.pipeline_mode<synchronous>, transform_indices = @transform_1, window_bounds = array<i64: 7, 256, 512>}, {pipeline_mode = #tpu.pipeline_mode<synchronous>, transform_indices = @transform_2, window_bounds = array<i64: 2, 256>}]} {
    %c0 = arith.constant 0 : index
    %c0_0 = arith.constant 0 : index
    %0 = vector.load %arg1[%c0, %c0_0] : memref<4x256xf32, #tpu.memory_space<vmem>>, vector<4x256xf32>
    %c0_i32 = arith.constant 0 : i32
    %1 = arith.index_cast %c0_i32 : i32 to index
    %c0_1 = arith.constant 0 : index
    %c0_2 = arith.constant 0 : index
    %2 = vector.load %arg2[%1, %c0_1, %c0_2] : memref<7x256x512xbf16, #tpu.memory_space<vmem>>, vector<1x256x512xbf16>
    %3 = vector.shape_cast %2 : vector<1x256x512xbf16> to vector<256x512xbf16>
    %4 = arith.extf %3 : vector<256x512xbf16> to vector<256x512xf32>
    %cst = arith.constant dense<0.000000e+00> : vector<4x512xf32>
    %5 = tpu.matmul %0, %4, %cst {dimension_numbers = #tpu.dot_dimension_numbers<[1], [0], [0], [1], [0, 0, 1, 1], [], []>} : vector<4x256xf32>, vector<256x512xf32>, vector<4x512xf32> -> vector<4x512xf32>
    %6 = vector.extract_strided_slice %5 {offsets = [0, 0], sizes = [4, 256], strides = [1, 1]} : vector<4x512xf32> to vector<4x256xf32>
    %7 = vector.extract_strided_slice %5 {offsets = [0, 256], sizes = [4, 256], strides = [1, 1]} : vector<4x512xf32> to vector<4x256xf32>
    %8 = vector.extract_strided_slice %6 {offsets = [0, 0], sizes = [2, 256], strides = [1, 1]} : vector<4x256xf32> to vector<2x256xf32>
    %9 = vector.extract_strided_slice %7 {offsets = [2, 0], sizes = [2, 256], strides = [1, 1]} : vector<4x256xf32> to vector<2x256xf32>
    %10 = arith.subf %8, %9 : vector<2x256xf32>
    %11 = vector.extract_strided_slice %7 {offsets = [0, 0], sizes = [2, 256], strides = [1, 1]} : vector<4x256xf32> to vector<2x256xf32>
    %12 = vector.extract_strided_slice %6 {offsets = [2, 0], sizes = [2, 256], strides = [1, 1]} : vector<4x256xf32> to vector<2x256xf32>
    %13 = arith.addf %11, %12 : vector<2x256xf32>
    %14 = tpu.concatenate %10, %13 in 0 : vector<2x256xf32>, vector<2x256xf32> -> vector<4x256xf32>
    %c1_i32 = arith.constant 1 : i32
    %15 = arith.index_cast %c1_i32 : i32 to index
    %c0_3 = arith.constant 0 : index
    %c0_4 = arith.constant 0 : index
    %16 = vector.load %arg2[%15, %c0_3, %c0_4] : memref<7x256x512xbf16, #tpu.memory_space<vmem>>, vector<1x256x512xbf16>
    %17 = vector.shape_cast %16 : vector<1x256x512xbf16> to vector<256x512xbf16>
    %18 = arith.extf %17 : vector<256x512xbf16> to vector<256x512xf32>
    %cst_5 = arith.constant dense<0.000000e+00> : vector<4x512xf32>
    %19 = tpu.matmul %14, %18, %cst_5 {dimension_numbers = #tpu.dot_dimension_numbers<[1], [0], [0], [1], [0, 0, 1, 1], [], []>} : vector<4x256xf32>, vector<256x512xf32>, vector<4x512xf32> -> vector<4x512xf32>
    %20 = vector.extract_strided_slice %19 {offsets = [0, 0], sizes = [4, 256], strides = [1, 1]} : vector<4x512xf32> to vector<4x256xf32>
    %21 = vector.extract_strided_slice %19 {offsets = [0, 256], sizes = [4, 256], strides = [1, 1]} : vector<4x512xf32> to vector<4x256xf32>
    %22 = vector.extract_strided_slice %20 {offsets = [0, 0], sizes = [2, 256], strides = [1, 1]} : vector<4x256xf32> to vector<2x256xf32>
    %23 = vector.extract_strided_slice %21 {offsets = [2, 0], sizes = [2, 256], strides = [1, 1]} : vector<4x256xf32> to vector<2x256xf32>
    %24 = arith.subf %22, %23 : vector<2x256xf32>
    %25 = vector.extract_strided_slice %21 {offsets = [0, 0], sizes = [2, 256], strides = [1, 1]} : vector<4x256xf32> to vector<2x256xf32>
    %26 = vector.extract_strided_slice %20 {offsets = [2, 0], sizes = [2, 256], strides = [1, 1]} : vector<4x256xf32> to vector<2x256xf32>
    %27 = arith.addf %25, %26 : vector<2x256xf32>
    %28 = tpu.concatenate %24, %27 in 0 : vector<2x256xf32>, vector<2x256xf32> -> vector<4x256xf32>
    %c2_i32 = arith.constant 2 : i32
    %29 = arith.index_cast %c2_i32 : i32 to index
    %c0_6 = arith.constant 0 : index
    %c0_7 = arith.constant 0 : index
    %30 = vector.load %arg2[%29, %c0_6, %c0_7] : memref<7x256x512xbf16, #tpu.memory_space<vmem>>, vector<1x256x512xbf16>
    %31 = vector.shape_cast %30 : vector<1x256x512xbf16> to vector<256x512xbf16>
    %32 = arith.extf %31 : vector<256x512xbf16> to vector<256x512xf32>
    %cst_8 = arith.constant dense<0.000000e+00> : vector<4x512xf32>
    %33 = tpu.matmul %28, %32, %cst_8 {dimension_numbers = #tpu.dot_dimension_numbers<[1], [0], [0], [1], [0, 0, 1, 1], [], []>} : vector<4x256xf32>, vector<256x512xf32>, vector<4x512xf32> -> vector<4x512xf32>
    %34 = vector.extract_strided_slice %33 {offsets = [0, 0], sizes = [4, 256], strides = [1, 1]} : vector<4x512xf32> to vector<4x256xf32>
    %35 = vector.extract_strided_slice %33 {offsets = [0, 256], sizes = [4, 256], strides = [1, 1]} : vector<4x512xf32> to vector<4x256xf32>
    %36 = vector.extract_strided_slice %34 {offsets = [0, 0], sizes = [2, 256], strides = [1, 1]} : vector<4x256xf32> to vector<2x256xf32>
    %37 = vector.extract_strided_slice %35 {offsets = [2, 0], sizes = [2, 256], strides = [1, 1]} : vector<4x256xf32> to vector<2x256xf32>
    %38 = arith.subf %36, %37 : vector<2x256xf32>
    %39 = vector.extract_strided_slice %35 {offsets = [0, 0], sizes = [2, 256], strides = [1, 1]} : vector<4x256xf32> to vector<2x256xf32>
    %40 = vector.extract_strided_slice %34 {offsets = [2, 0], sizes = [2, 256], strides = [1, 1]} : vector<4x256xf32> to vector<2x256xf32>
    %41 = arith.addf %39, %40 : vector<2x256xf32>
    %42 = tpu.concatenate %38, %41 in 0 : vector<2x256xf32>, vector<2x256xf32> -> vector<4x256xf32>
    %c3_i32 = arith.constant 3 : i32
    %43 = arith.index_cast %c3_i32 : i32 to index
    %c0_9 = arith.constant 0 : index
    %c0_10 = arith.constant 0 : index
    %44 = vector.load %arg2[%43, %c0_9, %c0_10] : memref<7x256x512xbf16, #tpu.memory_space<vmem>>, vector<1x256x512xbf16>
    %45 = vector.shape_cast %44 : vector<1x256x512xbf16> to vector<256x512xbf16>
    %46 = arith.extf %45 : vector<256x512xbf16> to vector<256x512xf32>
    %cst_11 = arith.constant dense<0.000000e+00> : vector<4x512xf32>
    %47 = tpu.matmul %42, %46, %cst_11 {dimension_numbers = #tpu.dot_dimension_numbers<[1], [0], [0], [1], [0, 0, 1, 1], [], []>} : vector<4x256xf32>, vector<256x512xf32>, vector<4x512xf32> -> vector<4x512xf32>
    %48 = vector.extract_strided_slice %47 {offsets = [0, 0], sizes = [4, 256], strides = [1, 1]} : vector<4x512xf32> to vector<4x256xf32>
    %49 = vector.extract_strided_slice %47 {offsets = [0, 256], sizes = [4, 256], strides = [1, 1]} : vector<4x512xf32> to vector<4x256xf32>
    %50 = vector.extract_strided_slice %48 {offsets = [0, 0], sizes = [2, 256], strides = [1, 1]} : vector<4x256xf32> to vector<2x256xf32>
    %51 = vector.extract_strided_slice %49 {offsets = [2, 0], sizes = [2, 256], strides = [1, 1]} : vector<4x256xf32> to vector<2x256xf32>
    %52 = arith.subf %50, %51 : vector<2x256xf32>
    %53 = vector.extract_strided_slice %49 {offsets = [0, 0], sizes = [2, 256], strides = [1, 1]} : vector<4x256xf32> to vector<2x256xf32>
    %54 = vector.extract_strided_slice %48 {offsets = [2, 0], sizes = [2, 256], strides = [1, 1]} : vector<4x256xf32> to vector<2x256xf32>
    %55 = arith.addf %53, %54 : vector<2x256xf32>
    %56 = tpu.concatenate %52, %55 in 0 : vector<2x256xf32>, vector<2x256xf32> -> vector<4x256xf32>
    %c4_i32 = arith.constant 4 : i32
    %57 = arith.index_cast %c4_i32 : i32 to index
    %c0_12 = arith.constant 0 : index
    %c0_13 = arith.constant 0 : index
    %58 = vector.load %arg2[%57, %c0_12, %c0_13] : memref<7x256x512xbf16, #tpu.memory_space<vmem>>, vector<1x256x512xbf16>
    %59 = vector.shape_cast %58 : vector<1x256x512xbf16> to vector<256x512xbf16>
    %60 = arith.extf %59 : vector<256x512xbf16> to vector<256x512xf32>
    %cst_14 = arith.constant dense<0.000000e+00> : vector<4x512xf32>
    %61 = tpu.matmul %56, %60, %cst_14 {dimension_numbers = #tpu.dot_dimension_numbers<[1], [0], [0], [1], [0, 0, 1, 1], [], []>} : vector<4x256xf32>, vector<256x512xf32>, vector<4x512xf32> -> vector<4x512xf32>
    %62 = vector.extract_strided_slice %61 {offsets = [0, 0], sizes = [4, 256], strides = [1, 1]} : vector<4x512xf32> to vector<4x256xf32>
    %63 = vector.extract_strided_slice %61 {offsets = [0, 256], sizes = [4, 256], strides = [1, 1]} : vector<4x512xf32> to vector<4x256xf32>
    %64 = vector.extract_strided_slice %62 {offsets = [0, 0], sizes = [2, 256], strides = [1, 1]} : vector<4x256xf32> to vector<2x256xf32>
    %65 = vector.extract_strided_slice %63 {offsets = [2, 0], sizes = [2, 256], strides = [1, 1]} : vector<4x256xf32> to vector<2x256xf32>
    %66 = arith.subf %64, %65 : vector<2x256xf32>
    %67 = vector.extract_strided_slice %63 {offsets = [0, 0], sizes = [2, 256], strides = [1, 1]} : vector<4x256xf32> to vector<2x256xf32>
    %68 = vector.extract_strided_slice %62 {offsets = [2, 0], sizes = [2, 256], strides = [1, 1]} : vector<4x256xf32> to vector<2x256xf32>
    %69 = arith.addf %67, %68 : vector<2x256xf32>
    %70 = tpu.concatenate %66, %69 in 0 : vector<2x256xf32>, vector<2x256xf32> -> vector<4x256xf32>
    %c5_i32 = arith.constant 5 : i32
    %71 = arith.index_cast %c5_i32 : i32 to index
    %c0_15 = arith.constant 0 : index
    %c0_16 = arith.constant 0 : index
    %72 = vector.load %arg2[%71, %c0_15, %c0_16] : memref<7x256x512xbf16, #tpu.memory_space<vmem>>, vector<1x256x512xbf16>
    %73 = vector.shape_cast %72 : vector<1x256x512xbf16> to vector<256x512xbf16>
    %74 = arith.extf %73 : vector<256x512xbf16> to vector<256x512xf32>
    %cst_17 = arith.constant dense<0.000000e+00> : vector<4x512xf32>
    %75 = tpu.matmul %70, %74, %cst_17 {dimension_numbers = #tpu.dot_dimension_numbers<[1], [0], [0], [1], [0, 0, 1, 1], [], []>} : vector<4x256xf32>, vector<256x512xf32>, vector<4x512xf32> -> vector<4x512xf32>
    %76 = vector.extract_strided_slice %75 {offsets = [0, 0], sizes = [4, 256], strides = [1, 1]} : vector<4x512xf32> to vector<4x256xf32>
    %77 = vector.extract_strided_slice %75 {offsets = [0, 256], sizes = [4, 256], strides = [1, 1]} : vector<4x512xf32> to vector<4x256xf32>
    %78 = vector.extract_strided_slice %76 {offsets = [0, 0], sizes = [2, 256], strides = [1, 1]} : vector<4x256xf32> to vector<2x256xf32>
    %79 = vector.extract_strided_slice %77 {offsets = [2, 0], sizes = [2, 256], strides = [1, 1]} : vector<4x256xf32> to vector<2x256xf32>
    %80 = arith.subf %78, %79 : vector<2x256xf32>
    %81 = vector.extract_strided_slice %77 {offsets = [0, 0], sizes = [2, 256], strides = [1, 1]} : vector<4x256xf32> to vector<2x256xf32>
    %82 = vector.extract_strided_slice %76 {offsets = [2, 0], sizes = [2, 256], strides = [1, 1]} : vector<4x256xf32> to vector<2x256xf32>
    %83 = arith.addf %81, %82 : vector<2x256xf32>
    %84 = tpu.concatenate %80, %83 in 0 : vector<2x256xf32>, vector<2x256xf32> -> vector<4x256xf32>
    %c6_i32 = arith.constant 6 : i32
    %85 = arith.index_cast %c6_i32 : i32 to index
    %c0_18 = arith.constant 0 : index
    %c0_19 = arith.constant 0 : index
    %86 = vector.load %arg2[%85, %c0_18, %c0_19] : memref<7x256x512xbf16, #tpu.memory_space<vmem>>, vector<1x256x512xbf16>
    %87 = vector.shape_cast %86 : vector<1x256x512xbf16> to vector<256x512xbf16>
    %88 = arith.extf %87 : vector<256x512xbf16> to vector<256x512xf32>
    %cst_20 = arith.constant dense<0.000000e+00> : vector<4x512xf32>
    %89 = tpu.matmul %84, %88, %cst_20 {dimension_numbers = #tpu.dot_dimension_numbers<[1], [0], [0], [1], [0, 0, 1, 1], [], []>} : vector<4x256xf32>, vector<256x512xf32>, vector<4x512xf32> -> vector<4x512xf32>
    %90 = vector.extract_strided_slice %89 {offsets = [0, 0], sizes = [4, 256], strides = [1, 1]} : vector<4x512xf32> to vector<4x256xf32>
    %91 = vector.extract_strided_slice %89 {offsets = [0, 256], sizes = [4, 256], strides = [1, 1]} : vector<4x512xf32> to vector<4x256xf32>
    %92 = vector.extract_strided_slice %90 {offsets = [0, 0], sizes = [2, 256], strides = [1, 1]} : vector<4x256xf32> to vector<2x256xf32>
    %93 = vector.extract_strided_slice %91 {offsets = [2, 0], sizes = [2, 256], strides = [1, 1]} : vector<4x256xf32> to vector<2x256xf32>
    %94 = arith.subf %92, %93 : vector<2x256xf32>
    %95 = vector.extract_strided_slice %91 {offsets = [0, 0], sizes = [2, 256], strides = [1, 1]} : vector<4x256xf32> to vector<2x256xf32>
    %96 = vector.extract_strided_slice %90 {offsets = [2, 0], sizes = [2, 256], strides = [1, 1]} : vector<4x256xf32> to vector<2x256xf32>
    %97 = arith.addf %95, %96 : vector<2x256xf32>
    %98 = tpu.concatenate %94, %97 in 0 : vector<2x256xf32>, vector<2x256xf32> -> vector<4x256xf32>
    %c7_i32 = arith.constant 7 : i32
    %99 = vector.extract_strided_slice %98 {offsets = [0, 0], sizes = [2, 256], strides = [1, 1]} : vector<4x256xf32> to vector<2x256xf32>
    %100 = vector.extract_strided_slice %98 {offsets = [2, 0], sizes = [2, 256], strides = [1, 1]} : vector<4x256xf32> to vector<2x256xf32>
    %101 = arith.mulf %99, %99 : vector<2x256xf32>
    %102 = arith.mulf %100, %100 : vector<2x256xf32>
    %103 = arith.addf %101, %102 : vector<2x256xf32>
    %c0_21 = arith.constant 0 : index
    %c0_22 = arith.constant 0 : index
    %104 = vector.load %arg3[%c0_21, %c0_22] : memref<2x256xf32, #tpu.memory_space<vmem>>, vector<2x256xf32>
    tpu.vector_store %arg3[%c0_21, %c0_22], %103 {strides = array<i32>} : memref<2x256xf32, #tpu.memory_space<vmem>>, vector<2x256xf32>,
    return
  }
  func.func @transform_0(%arg0: i32) -> (i32, i32) {
    %c0_i32 = arith.constant 0 : i32
    %c0_i32_0 = arith.constant 0 : i32
    %c0_i32_1 = arith.constant 0 : i32
    return %c0_i32, %c0_i32_0 : i32, i32
  }
  func.func @transform_1(%arg0: i32) -> (i32, i32, i32) {
    %c0_i32 = arith.constant 0 : i32
    %c0_i32_0 = arith.constant 0 : i32
    %c0_i32_1 = arith.constant 0 : i32
    %c0_i32_2 = arith.constant 0 : i32
    return %c0_i32, %c0_i32_0, %c0_i32_1 : i32, i32, i32
  }
  func.func @transform_2(%arg0: i32) -> (i32, i32) {
    %c0_i32 = arith.constant 0 : i32
    %c0_i32_0 = arith.constant 0 : i32
    %c0_i32_1 = arith.constant 0 : i32
    return %c0_i32, %c0_i32_0 : i32, i32
  }
}

</mosaic_0001>

<llo_original>
// kernel: qcbm_forward.1
$region0: #{qcbm_forward.1}
  #allocation0 [shape = 'u32[]', space=smem, size = 0x4, offset = 0x4, fixed_abs, tag = 'smem constant byte address 0x4 - core index']
  #allocation1 [shape = 'u32[144,128]{1,0:T(1,128)}', space=vmem, size = 0x12000, scoped, tag = 'internal scratch']
  %s0 = inlined_call_operand.vmem [shape: f32[4,256], index: 0, kind: input, shape index: {}]
  %s1 = inlined_call_operand.hbm [shape: bf16[7,256,512], index: 1, kind: input, shape index: {}]
  %s2 = inlined_call_operand.hbm [shape: f32[2,256], index: 2, kind: output, shape index: {}]
  %s3 = sld [smem:[#allocation0]]
  $region22: #{qcbm_forward.1} parent=0
    _
  %s5 = ssub.s32 1, %s3
  %s6 = scalar_select 0, %s5, %s3
  $region1: #{qcbm_forward.1} parent=0
    #allocation2 [shape = 'u8[1835008]{0}', space=vmem, size = 0x1c0000, scoped, tag = 'input window, operand 1, single buffered']
    #allocation3 [shape = 's32[1]{0}', space=sflag, size = 0x4, scoped, tag = 'scoped memory for qcbm_forward.1']
    #allocation4 [shape = 's32[1]{0}', space=sflag, size = 0x4, scoped, tag = 'scoped memory for qcbm_forward.1']
    #allocation5 [shape = 'u8[2048]{0}', space=vmem, size = 0x800, scoped, tag = 'output window, operand 0, single buffered']
    %7 = vsyncpa [#allocation3], 0
    %8 = vsyncpa [#allocation4], 0
    // Predicated region
    $region2: #{qcbm_forward.1} parent=1 // pred_check
      _
    $region3: #{qcbm_forward.1} parent=1 // pred_check_branch
      %10 = sbr.rel (0) target = $region5
    $region4: #{qcbm_forward.1} parent=1 // pred_region
      _
    $region5: #{qcbm_forward.1} parent=1 // pred_fallthru
      _
    // Predicated region
    $region6: #{qcbm_forward.1} parent=1 // pred_check
      _
    $region7: #{qcbm_forward.1} parent=1 // pred_check_branch
      %12 = sbr.rel (0) target = $region9
    $region8: #{qcbm_forward.1} parent=1 // pred_region
      %s14 = ssub.s32 57344, 57344
      %15 = vsyncadd [#allocation3], %s14
      %s16 = sshll.u32 [#allocation2], 4
      %s17 = int_to_ptr.vmem [resolvable:$true] %s16
      %22 = dma.hbm_to_vmem [thread:$0]  %s1, 57344, %s17, [#allocation3], 256, 256, 16
    $region9: #{qcbm_forward.1} parent=1 // pred_fallthru
      _
    // Predicated region
    $region10: #{qcbm_forward.1} parent=1 // pred_check
      _
    $region11: #{qcbm_forward.1} parent=1 // pred_check_branch
      %24 = sbr.rel (0) target = $region13
    $region12: #{qcbm_forward.1} parent=1 // pred_region
      %25 = dma.done [#allocation3], 57344
    $region13: #{qcbm_forward.1} parent=1 // pred_fallthru
      _
    %v26 = vld [vmem:[%s0] sm:$0xff]
    %v27 = vld [vmem:[#allocation2] sm:$0xff]
    %v28 = vld [vmem:[#allocation2 + $0x8] sm:$0xff]
    %v29 = vld [vmem:[#allocation2 + $0x10] sm:$0xff]
    %v30 = vld [vmem:[#allocation2 + $0x18] sm:$0xff]
    %v31 = vld [vmem:[#allocation2 + $0x20] sm:$0xff]
    %v32 = vld [vmem:[#allocation2 + $0x28] sm:$0xff]
    %v33 = vld [vmem:[#allocation2 + $0x30] sm:$0xff]
    %v34 = vld [vmem:[#allocation2 + $0x38] sm:$0xff]
    %v35 = vld [vmem:[#allocation2 + $0x40] sm:$0xff]
    %v36 = vld [vmem:[#allocation2 + $0x48] sm:$0xff]
    %v37 = vld [vmem:[#allocation2 + $0x50] sm:$0xff]
    %v38 = vld [vmem:[#allocation2 + $0x58] sm:$0xff]
    %v39 = vld [vmem:[#allocation2 + $0x60] sm:$0xff]
    %v40 = vld [vmem:[#allocation2 + $0x68] sm:$0xff]
    %v41 = vld [vmem:[#allocation2 + $0x70] sm:$0xff]
    %v42 = vld [vmem:[#allocation2 + $0x78] sm:$0xff]
    %v43 = vld [vmem:[#allocation2 + $0x80] sm:$0xff]
    %v44 = vld [vmem:[#allocation2 + $0x88] sm:$0xff]
    %v45 = vld [vmem:[#allocation2 + $0x90] sm:$0xff]
    %v46 = vld [vmem:[#allocation2 + $0x98] sm:$0xff]
    %v47 = vld [vmem:[#allocation2 + $0xa0] sm:$0xff]
    %v48 = vld [vmem:[#allocation2 + $0xa8] sm:$0xff]
    %v49 = vld [vmem:[#allocation2 + $0xb0] sm:$0xff]
    %v50 = vld [vmem:[#allocation2 + $0xb8] sm:$0xff]
    %v51 = vld [vmem:[#allocation2 + $0xc0] sm:$0xff]
    %v52 = vld [vmem:[#allocation2 + $0xc8] sm:$0xff]
    %v53 = vld [vmem:[#allocation2 + $0xd0] sm:$0xff]
    %v54 = vld [vmem:[#allocation2 + $0xd8] sm:$0xff]
    %v55 = vld [vmem:[#allocation2 + $0xe0] sm:$0xff]
    %v56 = vld [vmem:[#allocation2 + $0xe8] sm:$0xff]
    %v57 = vld [vmem:[#allocation2 + $0xf0] sm:$0xff]
    %v58 = vld [vmem:[#allocation2 + $0xf8] sm:$0xff]
    %v59 = vld [vmem:[#allocation2 + $0x100] sm:$0xff]
    %v60 = vld [vmem:[#allocation2 + $0x108] sm:$0xff]
    %v61 = vld [vmem:[#allocation2 + $0x110] sm:$0xff]
    %v62 = vld [vmem:[#allocation2 + $0x118] sm:$0xff]
    %v63 = vld [vmem:[#allocation2 + $0x120] sm:$0xff]
    %v64 = vld [vmem:[#allocation2 + $0x128] sm:$0xff]
    %v65 = vld [vmem:[#allocation2 + $0x130] sm:$0xff]
    %v66 = vld [vmem:[#allocation2 + $0x138] sm:$0xff]
    %v67 = vld [vmem:[#allocation2 + $0x140] sm:$0xff]
    %v68 = vld [vmem:[#allocation2 + $0x148] sm:$0xff]
    %v69 = vld [vmem:[#allocation2 + $0x150] sm:$0xff]
    %v70 = vld [vmem:[#allocation2 + $0x158] sm:$0xff]
    %v71 = vld [vmem:[#allocation2 + $0x160] sm:$0xff]
    %v72 = vld [vmem:[#allocation2 + $0x168] sm:$0xff]
    %v73 = vld [vmem:[#allocation2 + $0x170] sm:$0xff]
    %v74 = vld [vmem:[#allocation2 + $0x178] sm:$0xff]
    %v75 = vld [vmem:[#allocation2 + $0x180] sm:$0xff]
    %v76 = vld [vmem:[#allocation2 + $0x188] sm:$0xff]
    %v77 = vld [vmem:[#allocation2 + $0x190] sm:$0xff]
    %v78 = vld [vmem:[#allocation2 + $0x198] sm:$0xff]
    %v79 = vld [vmem:[#allocation2 + $0x1a0] sm:$0xff]
    %v80 = vld [vmem:[#allocation2 + $0x1a8] sm:$0xff]
    %v81 = vld [vmem:[#allocation2 + $0x1b0] sm:$0xff]
    %v82 = vld [vmem:[#allocation2 + $0x1b8] sm:$0xff]
    %v83 = vld [vmem:[#allocation2 + $0x1c0] sm:$0xff]
    %v84 = vld [vmem:[#allocation2 + $0x1c8] sm:$0xff]
    %v85 = vld [vmem:[#allocation2 + $0x1d0] sm:$0xff]
    %v86 = vld [vmem:[#allocation2 + $0x1d8] sm:$0xff]
    %v87 = vld [vmem:[#allocation2 + $0x1e0] sm:$0xff]
    %v88 = vld [vmem:[#allocation2 + $0x1e8] sm:$0xff]
    %v89 = vld [vmem:[#allocation2 + $0x1f0] sm:$0xff]
    %v90 = vld [vmem:[#allocation2 + $0x1f8] sm:$0xff]
    %v91 = vunpack.c.l.bf16 %v27
    %v92 = vunpack.c.h.bf16 %v27
    %v93 = vunpack.c.l.bf16 %v28
    %v94 = vunpack.c.h.bf16 %v28
    %v95 = vunpack.c.l.bf16 %v29
    %v96 = vunpack.c.h.bf16 %v29
    %v97 = vunpack.c.l.bf16 %v30
    %v98 = vunpack.c.h.bf16 %v30
    %v99 = vunpack.c.l.bf16 %v31
    %v100 = vunpack.c.h.bf16 %v31
    %v101 = vunpack.c.l.bf16 %v32
    %v102 = vunpack.c.h.bf16 %v32
    %v103 = vunpack.c.l.bf16 %v33
    %v104 = vunpack.c.h.bf16 %v33
    %v105 = vunpack.c.l.bf16 %v34
    %v106 = vunpack.c.h.bf16 %v34
    %v107 = vunpack.c.l.bf16 %v35
    %v108 = vunpack.c.h.bf16 %v35
    %v109 = vunpack.c.l.bf16 %v36
    %v110 = vunpack.c.h.bf16 %v36
    %v111 = vunpack.c.l.bf16 %v37
    %v112 = vunpack.c.h.bf16 %v37
    %v113 = vunpack.c.l.bf16 %v38
    %v114 = vunpack.c.h.bf16 %v38
    %v115 = vunpack.c.l.bf16 %v39
    %v116 = vunpack.c.h.bf16 %v39
    %v117 = vunpack.c.l.bf16 %v40
    %v118 = vunpack.c.h.bf16 %v40
    %v119 = vunpack.c.l.bf16 %v41
    %v120 = vunpack.c.h.bf16 %v41
    %v121 = vunpack.c.l.bf16 %v42
    %v122 = vunpack.c.h.bf16 %v42
    %v123 = vunpack.c.l.bf16 %v43
    %v124 = vunpack.c.h.bf16 %v43
    %v125 = vunpack.c.l.bf16 %v44
    %v126 = vunpack.c.h.bf16 %v44
    %v127 = vunpack.c.l.bf16 %v45
    %v128 = vunpack.c.h.bf16 %v45
    %v129 = vunpack.c.l.bf16 %v46
    %v130 = vunpack.c.h.bf16 %v46
    %v131 = vunpack.c.l.bf16 %v47
    %v132 = vunpack.c.h.bf16 %v47
    %v133 = vunpack.c.l.bf16 %v48
    %v134 = vunpack.c.h.bf16 %v48
    %v135 = vunpack.c.l.bf16 %v49
    %v136 = vunpack.c.h.bf16 %v49
    %v137 = vunpack.c.l.bf16 %v50
    %v138 = vunpack.c.h.bf16 %v50
    %v139 = vunpack.c.l.bf16 %v51
    %v140 = vunpack.c.h.bf16 %v51
    %v141 = vunpack.c.l.bf16 %v52
    %v142 = vunpack.c.h.bf16 %v52
    %v143 = vunpack.c.l.bf16 %v53
    %v144 = vunpack.c.h.bf16 %v53
    %v145 = vunpack.c.l.bf16 %v54
    %v146 = vunpack.c.h.bf16 %v54
    %v147 = vunpack.c.l.bf16 %v55
    %v148 = vunpack.c.h.bf16 %v55
    %v149 = vunpack.c.l.bf16 %v56
    %v150 = vunpack.c.h.bf16 %v56
    %v151 = vunpack.c.l.bf16 %v57
    %v152 = vunpack.c.h.bf16 %v57
    %v153 = vunpack.c.l.bf16 %v58
    %v154 = vunpack.c.h.bf16 %v58
    %v155 = vunpack.c.l.bf16 %v59
    %v156 = vunpack.c.h.bf16 %v59
    %v157 = vunpack.c.l.bf16 %v60
    %v158 = vunpack.c.h.bf16 %v60
    %v159 = vunpack.c.l.bf16 %v61
    %v160 = vunpack.c.h.bf16 %v61
    %v161 = vunpack.c.l.bf16 %v62
    %v162 = vunpack.c.h.bf16 %v62
    %v163 = vunpack.c.l.bf16 %v63
    %v164 = vunpack.c.h.bf16 %v63
    %v165 = vunpack.c.l.bf16 %v64
    %v166 = vunpack.c.h.bf16 %v64
    %v167 = vunpack.c.l.bf16 %v65
    %v168 = vunpack.c.h.bf16 %v65
    %v169 = vunpack.c.l.bf16 %v66
    %v170 = vunpack.c.h.bf16 %v66
    %v171 = vunpack.c.l.bf16 %v67
    %v172 = vunpack.c.h.bf16 %v67
    %v173 = vunpack.c.l.bf16 %v68
    %v174 = vunpack.c.h.bf16 %v68
    %v175 = vunpack.c.l.bf16 %v69
    %v176 = vunpack.c.h.bf16 %v69
    %v177 = vunpack.c.l.bf16 %v70
    %v178 = vunpack.c.h.bf16 %v70
    %v179 = vunpack.c.l.bf16 %v71
    %v180 = vunpack.c.h.bf16 %v71
    %v181 = vunpack.c.l.bf16 %v72
    %v182 = vunpack.c.h.bf16 %v72
    %v183 = vunpack.c.l.bf16 %v73
    %v184 = vunpack.c.h.bf16 %v73
    %v185 = vunpack.c.l.bf16 %v74
    %v186 = vunpack.c.h.bf16 %v74
    %v187 = vunpack.c.l.bf16 %v75
    %v188 = vunpack.c.h.bf16 %v75
    %v189 = vunpack.c.l.bf16 %v76
    %v190 = vunpack.c.h.bf16 %v76
    %v191 = vunpack.c.l.bf16 %v77
    %v192 = vunpack.c.h.bf16 %v77
    %v193 = vunpack.c.l.bf16 %v78
    %v194 = vunpack.c.h.bf16 %v78
    %v195 = vunpack.c.l.bf16 %v79
    %v196 = vunpack.c.h.bf16 %v79
    %v197 = vunpack.c.l.bf16 %v80
    %v198 = vunpack.c.h.bf16 %v80
    %v199 = vunpack.c.l.bf16 %v81
    %v200 = vunpack.c.h.bf16 %v81
    %v201 = vunpack.c.l.bf16 %v82
    %v202 = vunpack.c.h.bf16 %v82
    %v203 = vunpack.c.l.bf16 %v83
    %v204 = vunpack.c.h.bf16 %v83
    %v205 = vunpack.c.l.bf16 %v84
    %v206 = vunpack.c.h.bf16 %v84
    %v207 = vunpack.c.l.bf16 %v85
    %v208 = vunpack.c.h.bf16 %v85
    %v209 = vunpack.c.l.bf16 %v86
    %v210 = vunpack.c.h.bf16 %v86
    %v211 = vunpack.c.l.bf16 %v87
    %v212 = vunpack.c.h.bf16 %v87
    %v213 = vunpack.c.l.bf16 %v88
    %v214 = vunpack.c.h.bf16 %v88
    %v215 = vunpack.c.l.bf16 %v89
    %v216 = vunpack.c.h.bf16 %v89
    %v217 = vunpack.c.l.bf16 %v90
    %v218 = vunpack.c.h.bf16 %v90
    %v220 = vcombine.high %v26, %v26
    %222 = vmatprep.subr.mxu0 %v152
    %223 = vmatpush1.msra.mxu0 %v151
    %224 = vmatprep.subr.mxu0 %v148
    %225 = vmatpush1.msra.mxu0 %v147
    %226 = vmatprep.subr.mxu0 %v144
    %227 = vmatpush1.msra.mxu0 %v143
    %228 = vmatprep.subr.mxu0 %v140
    %229 = vmatpush1.msra.mxu0 %v139
    %230 = vmatprep.subr.mxu0 %v136
    %231 = vmatpush1.msra.mxu0 %v135
    %232 = vmatprep.subr.mxu0 %v132
    %233 = vmatpush1.msra.mxu0 %v131
    %234 = vmatprep.subr.mxu0 %v128
    %235 = vmatpush1.msra.mxu0 %v127
    %236 = vmatprep.subr.mxu0 %v124
    %237 = vmatpush1.msra.mxu0 %v123
    %238 = vmatprep.subr.mxu0 %v120
    %239 = vmatpush1.msra.mxu0 %v119
    %240 = vmatprep.subr.mxu0 %v116
    %241 = vmatpush1.msra.mxu0 %v115
    %242 = vmatprep.subr.mxu0 %v112
    %243 = vmatpush1.msra.mxu0 %v111
    %244 = vmatprep.subr.mxu0 %v108
    %245 = vmatpush1.msra.mxu0 %v107
    %246 = vmatprep.subr.mxu0 %v104
    %247 = vmatpush1.msra.mxu0 %v103
    %248 = vmatprep.subr.mxu0 %v100
    %249 = vmatpush1.msra.mxu0 %v99
    %250 = vmatprep.subr.mxu0 %v96
    %251 = vmatpush1.msra.mxu0 %v95
    %252 = vmatprep.subr.mxu0 %v92
    %253 = vmatpush1.msra.mxu0 %v91
    %254 = vmatprep.subr.mxu0 %v216
    %255 = vmatpush2.msra.mxu0 %v215
    %256 = vmatprep.subr.mxu0 %v212
    %257 = vmatpush2.msra.mxu0 %v211
    %258 = vmatprep.subr.mxu0 %v208
    %259 = vmatpush2.msra.mxu0 %v207
    %260 = vmatprep.subr.mxu0 %v204
    %261 = vmatpush2.msra.mxu0 %v203
    %262 = vmatprep.subr.mxu0 %v200
    %263 = vmatpush2.msra.mxu0 %v199
    %264 = vmatprep.subr.mxu0 %v196
    %265 = vmatpush2.msra.mxu0 %v195
    %266 = vmatprep.subr.mxu0 %v192
    %267 = vmatpush2.msra.mxu0 %v191
    %268 = vmatprep.subr.mxu0 %v188
    %269 = vmatpush2.msra.mxu0 %v187
    %270 = vmatprep.subr.mxu0 %v184
    %271 = vmatpush2.msra.mxu0 %v183
    %272 = vmatprep.subr.mxu0 %v180
    %273 = vmatpush2.msra.mxu0 %v179
    %274 = vmatprep.subr.mxu0 %v176
    %275 = vmatpush2.msra.mxu0 %v175
    %276 = vmatprep.subr.mxu0 %v172
    %277 = vmatpush2.msra.mxu0 %v171
    %278 = vmatprep.subr.mxu0 %v168
    %279 = vmatpush2.msra.mxu0 %v167
    %280 = vmatprep.subr.mxu0 %v164
    %281 = vmatpush2.msra.mxu0 %v163
    %282 = vmatprep.subr.mxu0 %v160
    %283 = vmatpush2.msra.mxu0 %v159
    %284 = vmatprep.subr.mxu0 %v156
    %285 = vmatpush2.msra.mxu0 %v155
    %286 = vmatprep.mubr.f32.mxu0 %v220
    %287 = vmatmul.mubr.f32.gmra.mxu0 %v26
    %v288 = vpop.f32.mrf.mxu0
    %v289 = vadd.f32 0.0, %v288
    %v290 = vpop.f32.mrf.mxu0
    %v291 = vadd.f32 0.0, %v290
    %292 = vdwg.mxu0
    %293 = vmatprep.subr.mxu0 %v154
    %294 = vmatpush1.msra.mxu0 %v153
    %295 = vmatprep.subr.mxu0 %v150
    %296 = vmatpush1.msra.mxu0 %v149
    %297 = vmatprep.subr.mxu0 %v146
    %298 = vmatpush1.msra.mxu0 %v145
    %299 = vmatprep.subr.mxu0 %v142
    %300 = vmatpush1.msra.mxu0 %v141
    %301 = vmatprep.subr.mxu0 %v138
    %302 = vmatpush1.msra.mxu0 %v137
    %303 = vmatprep.subr.mxu0 %v134
    %304 = vmatpush1.msra.mxu0 %v133
    %305 = vmatprep.subr.mxu0 %v130
    %306 = vmatpush1.msra.mxu0 %v129
    %307 = vmatprep.subr.mxu0 %v126
    %308 = vmatpush1.msra.mxu0 %v125
    %309 = vmatprep.subr.mxu0 %v122
    %310 = vmatpush1.msra.mxu0 %v121
    %311 = vmatprep.subr.mxu0 %v118
    %312 = vmatpush1.msra.mxu0 %v117
    %313 = vmatprep.subr.mxu0 %v114
    %314 = vmatpush1.msra.mxu0 %v113
    %315 = vmatprep.subr.mxu0 %v110
    %316 = vmatpush1.msra.mxu0 %v109
    %317 = vmatprep.subr.mxu0 %v106
    %318 = vmatpush1.msra.mxu0 %v105
    %319 = vmatprep.subr.mxu0 %v102
    %320 = vmatpush1.msra.mxu0 %v101
    %321 = vmatprep.subr.mxu0 %v98
    %322 = vmatpush1.msra.mxu0 %v97
    %323 = vmatprep.subr.mxu0 %v94
    %324 = vmatpush1.msra.mxu0 %v93
    %325 = vmatprep.subr.mxu0 %v218
    %326 = vmatpush2.msra.mxu0 %v217
    %327 = vmatprep.subr.mxu0 %v214
    %328 = vmatpush2.msra.mxu0 %v213
    %329 = vmatprep.subr.mxu0 %v210
    %330 = vmatpush2.msra.mxu0 %v209
    %331 = vmatprep.subr.mxu0 %v206
    %332 = vmatpush2.msra.mxu0 %v205
    %333 = vmatprep.subr.mxu0 %v202
    %334 = vmatpush2.msra.mxu0 %v201
    %335 = vmatprep.subr.mxu0 %v198
    %336 = vmatpush2.msra.mxu0 %v197
    %337 = vmatprep.subr.mxu0 %v194
    %338 = vmatpush2.msra.mxu0 %v193
    %339 = vmatprep.subr.mxu0 %v190
    %340 = vmatpush2.msra.mxu0 %v189
    %341 = vmatprep.subr.mxu0 %v186
    %342 = vmatpush2.msra.mxu0 %v185
    %343 = vmatprep.subr.mxu0 %v182
    %344 = vmatpush2.msra.mxu0 %v181
    %345 = vmatprep.subr.mxu0 %v178
    %346 = vmatpush2.msra.mxu0 %v177
    %347 = vmatprep.subr.mxu0 %v174
    %348 = vmatpush2.msra.mxu0 %v173
    %349 = vmatprep.subr.mxu0 %v170
    %350 = vmatpush2.msra.mxu0 %v169
    %351 = vmatprep.subr.mxu0 %v166
    %352 = vmatpush2.msra.mxu0 %v165
    %353 = vmatprep.subr.mxu0 %v162
    %354 = vmatpush2.msra.mxu0 %v161
    %355 = vmatprep.subr.mxu0 %v158
    %356 = vmatpush2.msra.mxu0 %v157
    %357 = vmatprep.mubr.f32.mxu0 %v220
    %358 = vmatmul.mubr.f32.gmra.mxu0 %v26
    %v359 = vpop.f32.mrf.mxu0
    %v360 = vadd.f32 0.0, %v359
    %v361 = vpop.f32.mrf.mxu0
    %v362 = vadd.f32 0.0, %v361
    %363 = vdwg.mxu0
    %v366 = vrot.slane %v360, 2
    %v367 = vrot.slane %v362, 2
    %v370 = vsub.f32 %v289, %v366
    %v371 = vsub.f32 %v291, %v367
    %v374 = vrot.slane %v289, 2
    %v375 = vrot.slane %v291, 2
    %v378 = vadd.f32 %v360, %v374
    %v379 = vadd.f32 %v362, %v375
    %v382 = vrot.slane %v378, 6
    %v383 = vrot.slane %v379, 6
    %vm386 = vcmask 1041408
    %v387 = vsel %vm386, %v370, %v382
    %v388 = vsel %vm386, %v371, %v383
    %s389 = scalar_lea.vmem [#allocation2], 512
    %v390 = vld [vmem:[%s389] sm:$0xff]
    %v391 = vld [vmem:[%s389 + $0x8] sm:$0xff]
    %v392 = vld [vmem:[%s389 + $0x10] sm:$0xff]
    %v393 = vld [vmem:[%s389 + $0x18] sm:$0xff]
    %v394 = vld [vmem:[%s389 + $0x20] sm:$0xff]
    %v395 = vld [vmem:[%s389 + $0x28] sm:$0xff]
    %v396 = vld [vmem:[%s389 + $0x30] sm:$0xff]
    %v397 = vld [vmem:[%s389 + $0x38] sm:$0xff]
    %v398 = vld [vmem:[%s389 + $0x40] sm:$0xff]
    %v399 = vld [vmem:[%s389 + $0x48] sm:$0xff]
    %v400 = vld [vmem:[%s389 + $0x50] sm:$0xff]
    %v401 = vld [vmem:[%s389 + $0x58] sm:$0xff]
    %v402 = vld [vmem:[%s389 + $0x60] sm:$0xff]
    %v403 = vld [vmem:[%s389 + $0x68] sm:$0xff]
    %v404 = vld [vmem:[%s389 + $0x70] sm:$0xff]
    %v405 = vld [vmem:[%s389 + $0x78] sm:$0xff]
    %v406 = vld [vmem:[%s389 + $0x80] sm:$0xff]
    %v407 = vld [vmem:[%s389 + $0x88] sm:$0xff]
    %v408 = vld [vmem:[%s389 + $0x90] sm:$0xff]
    %v409 = vld [vmem:[%s389 + $0x98] sm:$0xff]
    %v410 = vld [vmem:[%s389 + $0xa0] sm:$0xff]
    %v411 = vld [vmem:[%s389 + $0xa8] sm:$0xff]
    %v412 = vld [vmem:[%s389 + $0xb0] sm:$0xff]
    %v413 = vld [vmem:[%s389 + $0xb8] sm:$0xff]
    %v414 = vld [vmem:[%s389 + $0xc0] sm:$0xff]
    %v415 = vld [vmem:[%s389 + $0xc8] sm:$0xff]
    %v416 = vld [vmem:[%s389 + $0xd0] sm:$0xff]
    %v417 = vld [vmem:[%s389 + $0xd8] sm:$0xff]
    %v418 = vld [vmem:[%s389 + $0xe0] sm:$0xff]
    %v419 = vld [vmem:[%s389 + $0xe8] sm:$0xff]
    %v420 = vld [vmem:[%s389 + $0xf0] sm:$0xff]
    %v421 = vld [vmem:[%s389 + $0xf8] sm:$0xff]
    %v422 = vld [vmem:[%s389 + $0x100] sm:$0xff]
    %v423 = vld [vmem:[%s389 + $0x108] sm:$0xff]
    %v424 = vld [vmem:[%s389 + $0x110] sm:$0xff]
    %v425 = vld [vmem:[%s389 + $0x118] sm:$0xff]
    %v426 = vld [vmem:[%s389 + $0x120] sm:$0xff]
    %v427 = vld [vmem:[%s389 + $0x128] sm:$0xff]
    %v428 = vld [vmem:[%s389 + $0x130] sm:$0xff]
    %v429 = vld [vmem:[%s389 + $0x138] sm:$0xff]
    %v430 = vld [vmem:[%s389 + $0x140] sm:$0xff]
    %v431 = vld [vmem:[%s389 + $0x148] sm:$0xff]
    %v432 = vld [vmem:[%s389 + $0x150] sm:$0xff]
    %v433 = vld [vmem:[%s389 + $0x158] sm:$0xff]
    %v434 = vld [vmem:[%s389 + $0x160] sm:$0xff]
    %v435 = vld [vmem:[%s389 + $0x168] sm:$0xff]
    %v436 = vld [vmem:[%s389 + $0x170] sm:$0xff]
    %v437 = vld [vmem:[%s389 + $0x178] sm:$0xff]
    %v438 = vld [vmem:[%s389 + $0x180] sm:$0xff]
    %v439 = vld [vmem:[%s389 + $0x188] sm:$0xff]
    %v440 = vld [vmem:[%s389 + $0x190] sm:$0xff]
    %v441 = vld [vmem:[%s389 + $0x198] sm:$0xff]
    %v442 = vld [vmem:[%s389 + $0x1a0] sm:$0xff]
    %v443 = vld [vmem:[%s389 + $0x1a8] sm:$0xff]
    %v444 = vld [vmem:[%s389 + $0x1b0] sm:$0xff]
    %v445 = vld [vmem:[%s389 + $0x1b8] sm:$0xff]
    %v446 = vld [vmem:[%s389 + $0x1c0] sm:$0xff]
    %v447 = vld [vmem:[%s389 + $0x1c8] sm:$0xff]
    %v448 = vld [vmem:[%s389 + $0x1d0] sm:$0xff]
    %v449 = vld [vmem:[%s389 + $0x1d8] sm:$0xff]
    %v450 = vld [vmem:[%s389 + $0x1e0] sm:$0xff]
    %v451 = vld [vmem:[%s389 + $0x1e8] sm:$0xff]
    %v452 = vld [vmem:[%s389 + $0x1f0] sm:$0xff]
    %v453 = vld [vmem:[%s389 + $0x1f8] sm:$0xff]
    %v454 = vunpack.c.l.bf16 %v390
    %v455 = vunpack.c.h.bf16 %v390
    %v456 = vunpack.c.l.bf16 %v391
    %v457 = vunpack.c.h.bf16 %v391
    %v458 = vunpack.c.l.bf16 %v392
    %v459 = vunpack.c.h.bf16 %v392
    %v460 = vunpack.c.l.bf16 %v393
    %v461 = vunpack.c.h.bf16 %v393
    %v462 = vunpack.c.l.bf16 %v394
    %v463 = vunpack.c.h.bf16 %v394
    %v464 = vunpack.c.l.bf16 %v395
    %v465 = vunpack.c.h.bf16 %v395
    %v466 = vunpack.c.l.bf16 %v396
    %v467 = vunpack.c.h.bf16 %v396
    %v468 = vunpack.c.l.bf16 %v397
    %v469 = vunpack.c.h.bf16 %v397
    %v470 = vunpack.c.l.bf16 %v398
    %v471 = vunpack.c.h.bf16 %v398
    %v472 = vunpack.c.l.bf16 %v399
    %v473 = vunpack.c.h.bf16 %v399
    %v474 = vunpack.c.l.bf16 %v400
    %v475 = vunpack.c.h.bf16 %v400
    %v476 = vunpack.c.l.bf16 %v401
    %v477 = vunpack.c.h.bf16 %v401
    %v478 = vunpack.c.l.bf16 %v402
    %v479 = vunpack.c.h.bf16 %v402
    %v480 = vunpack.c.l.bf16 %v403
    %v481 = vunpack.c.h.bf16 %v403
    %v482 = vunpack.c.l.bf16 %v404
    %v483 = vunpack.c.h.bf16 %v404
    %v484 = vunpack.c.l.bf16 %v405
    %v485 = vunpack.c.h.bf16 %v405
    %v486 = vunpack.c.l.bf16 %v406
    %v487 = vunpack.c.h.bf16 %v406
    %v488 = vunpack.c.l.bf16 %v407
    %v489 = vunpack.c.h.bf16 %v407
    %v490 = vunpack.c.l.bf16 %v408
    %v491 = vunpack.c.h.bf16 %v408
    %v492 = vunpack.c.l.bf16 %v409
    %v493 = vunpack.c.h.bf16 %v409
    %v494 = vunpack.c.l.bf16 %v410
    %v495 = vunpack.c.h.bf16 %v410
    %v496 = vunpack.c.l.bf16 %v411
    %v497 = vunpack.c.h.bf16 %v411
    %v498 = vunpack.c.l.bf16 %v412
    %v499 = vunpack.c.h.bf16 %v412
    %v500 = vunpack.c.l.bf16 %v413
    %v501 = vunpack.c.h.bf16 %v413
    %v502 = vunpack.c.l.bf16 %v414
    %v503 = vunpack.c.h.bf16 %v414
    %v504 = vunpack.c.l.bf16 %v415
    %v505 = vunpack.c.h.bf16 %v415
    %v506 = vunpack.c.l.bf16 %v416
    %v507 = vunpack.c.h.bf16 %v416
    %v508 = vunpack.c.l.bf16 %v417
    %v509 = vunpack.c.h.bf16 %v417
    %v510 = vunpack.c.l.bf16 %v418
    %v511 = vunpack.c.h.bf16 %v418
    %v512 = vunpack.c.l.bf16 %v419
    %v513 = vunpack.c.h.bf16 %v419
    %v514 = vunpack.c.l.bf16 %v420
    %v515 = vunpack.c.h.bf16 %v420
    %v516 = vunpack.c.l.bf16 %v421
    %v517 = vunpack.c.h.bf16 %v421
    %v518 = vunpack.c.l.bf16 %v422
    %v519 = vunpack.c.h.bf16 %v422
    %v520 = vunpack.c.l.bf16 %v423
    %v521 = vunpack.c.h.bf16 %v423
    %v522 = vunpack.c.l.bf16 %v424
    %v523 = vunpack.c.h.bf16 %v424
    %v524 = vunpack.c.l.bf16 %v425
    %v525 = vunpack.c.h.bf16 %v425
    %v526 = vunpack.c.l.bf16 %v426
    %v527 = vunpack.c.h.bf16 %v426
    %v528 = vunpack.c.l.bf16 %v427
    %v529 = vunpack.c.h.bf16 %v427
    %v530 = vunpack.c.l.bf16 %v428
    %v531 = vunpack.c.h.bf16 %v428
    %v532 = vunpack.c.l.bf16 %v429
    %v533 = vunpack.c.h.bf16 %v429
    %v534 = vunpack.c.l.bf16 %v430
    %v535 = vunpack.c.h.bf16 %v430
    %v536 = vunpack.c.l.bf16 %v431
    %v537 = vunpack.c.h.bf16 %v431
    %v538 = vunpack.c.l.bf16 %v432
    %v539 = vunpack.c.h.bf16 %v432
    %v540 = vunpack.c.l.bf16 %v433
    %v541 = vunpack.c.h.bf16 %v433
    %v542 = vunpack.c.l.bf16 %v434
    %v543 = vunpack.c.h.bf16 %v434
    %v544 = vunpack.c.l.bf16 %v435
    %v545 = vunpack.c.h.bf16 %v435
    %v546 = vunpack.c.l.bf16 %v436
    %v547 = vunpack.c.h.bf16 %v436
    %v548 = vunpack.c.l.bf16 %v437
    %v549 = vunpack.c.h.bf16 %v437
    %v550 = vunpack.c.l.bf16 %v438
    %v551 = vunpack.c.h.bf16 %v438
    %v552 = vunpack.c.l.bf16 %v439
    %v553 = vunpack.c.h.bf16 %v439
    %v554 = vunpack.c.l.bf16 %v440
    %v555 = vunpack.c.h.bf16 %v440
    %v556 = vunpack.c.l.bf16 %v441
    %v557 = vunpack.c.h.bf16 %v441
    %v558 = vunpack.c.l.bf16 %v442
    %v559 = vunpack.c.h.bf16 %v442
    %v560 = vunpack.c.l.bf16 %v443
    %v561 = vunpack.c.h.bf16 %v443
    %v562 = vunpack.c.l.bf16 %v444
    %v563 = vunpack.c.h.bf16 %v444
    %v564 = vunpack.c.l.bf16 %v445
    %v565 = vunpack.c.h.bf16 %v445
    %v566 = vunpack.c.l.bf16 %v446
    %v567 = vunpack.c.h.bf16 %v446
    %v568 = vunpack.c.l.bf16 %v447
    %v569 = vunpack.c.h.bf16 %v447
    %v570 = vunpack.c.l.bf16 %v448
    %v571 = vunpack.c.h.bf16 %v448
    %v572 = vunpack.c.l.bf16 %v449
    %v573 = vunpack.c.h.bf16 %v449
    %v574 = vunpack.c.l.bf16 %v450
    %v575 = vunpack.c.h.bf16 %v450
    %v576 = vunpack.c.l.bf16 %v451
    %v577 = vunpack.c.h.bf16 %v451
    %v578 = vunpack.c.l.bf16 %v452
    %v579 = vunpack.c.h.bf16 %v452
    %v580 = vunpack.c.l.bf16 %v453
    %v581 = vunpack.c.h.bf16 %v453
    %582 = vmatprep.subr.mxu0 %v515
    %583 = vmatpush1.msra.mxu0 %v514
    %584 = vmatprep.subr.mxu0 %v511
    %585 = vmatpush1.msra.mxu0 %v510
    %586 = vmatprep.subr.mxu0 %v507
    %587 = vmatpush1.msra.mxu0 %v506
    %588 = vmatprep.subr.mxu0 %v503
    %589 = vmatpush1.msra.mxu0 %v502
    %590 = vmatprep.subr.mxu0 %v499
    %591 = vmatpush1.msra.mxu0 %v498
    %592 = vmatprep.subr.mxu0 %v495
    %593 = vmatpush1.msra.mxu0 %v494
    %594 = vmatprep.subr.mxu0 %v491
    %595 = vmatpush1.msra.mxu0 %v490
    %596 = vmatprep.subr.mxu0 %v487
    %597 = vmatpush1.msra.mxu0 %v486
    %598 = vmatprep.subr.mxu0 %v483
    %599 = vmatpush1.msra.mxu0 %v482
    %600 = vmatprep.subr.mxu0 %v479
    %601 = vmatpush1.msra.mxu0 %v478
    %602 = vmatprep.subr.mxu0 %v475
    %603 = vmatpush1.msra.mxu0 %v474
    %604 = vmatprep.subr.mxu0 %v471
    %605 = vmatpush1.msra.mxu0 %v470
    %606 = vmatprep.subr.mxu0 %v467
    %607 = vmatpush1.msra.mxu0 %v466
    %608 = vmatprep.subr.mxu0 %v463
    %609 = vmatpush1.msra.mxu0 %v462
    %610 = vmatprep.subr.mxu0 %v459
    %611 = vmatpush1.msra.mxu0 %v458
    %612 = vmatprep.subr.mxu0 %v455
    %613 = vmatpush1.msra.mxu0 %v454
    %614 = vmatprep.subr.mxu0 %v579
    %615 = vmatpush2.msra.mxu0 %v578
    %616 = vmatprep.subr.mxu0 %v575
    %617 = vmatpush2.msra.mxu0 %v574
    %618 = vmatprep.subr.mxu0 %v571
    %619 = vmatpush2.msra.mxu0 %v570
    %620 = vmatprep.subr.mxu0 %v567
    %621 = vmatpush2.msra.mxu0 %v566
    %622 = vmatprep.subr.mxu0 %v563
    %623 = vmatpush2.msra.mxu0 %v562
    %624 = vmatprep.subr.mxu0 %v559
    %625 = vmatpush2.msra.mxu0 %v558
    %626 = vmatprep.subr.mxu0 %v555
    %627 = vmatpush2.msra.mxu0 %v554
    %628 = vmatprep.subr.mxu0 %v551
    %629 = vmatpush2.msra.mxu0 %v550
    %630 = vmatprep.subr.mxu0 %v547
    %631 = vmatpush2.msra.mxu0 %v546
    %632 = vmatprep.subr.mxu0 %v543
    %633 = vmatpush2.msra.mxu0 %v542
    %634 = vmatprep.subr.mxu0 %v539
    %635 = vmatpush2.msra.mxu0 %v538
    %636 = vmatprep.subr.mxu0 %v535
    %637 = vmatpush2.msra.mxu0 %v534
    %638 = vmatprep.subr.mxu0 %v531
    %639 = vmatpush2.msra.mxu0 %v530
    %640 = vmatprep.subr.mxu0 %v527
    %641 = vmatpush2.msra.mxu0 %v526
    %642 = vmatprep.subr.mxu0 %v523
    %643 = vmatpush2.msra.mxu0 %v522
    %644 = vmatprep.subr.mxu0 %v519
    %645 = vmatpush2.msra.mxu0 %v518
    %646 = vmatprep.mubr.f32.mxu0 %v388
    %647 = vmatmul.mubr.f32.gmra.mxu0 %v387
    %v648 = vpop.f32.mrf.mxu0
    %v649 = vadd.f32 0.0, %v648
    %v650 = vpop.f32.mrf.mxu0
    %v651 = vadd.f32 0.0, %v650
    %652 = vdwg.mxu0
    %653 = vmatprep.subr.mxu0 %v517
    %654 = vmatpush1.msra.mxu0 %v516
    %655 = vmatprep.subr.mxu0 %v513
    %656 = vmatpush1.msra.mxu0 %v512
    %657 = vmatprep.subr.mxu0 %v509
    %658 = vmatpush1.msra.mxu0 %v508
    %659 = vmatprep.subr.mxu0 %v505
    %660 = vmatpush1.msra.mxu0 %v504
    %661 = vmatprep.subr.mxu0 %v501
    %662 = vmatpush1.msra.mxu0 %v500
    %663 = vmatprep.subr.mxu0 %v497
    %664 = vmatpush1.msra.mxu0 %v496
    %665 = vmatprep.subr.mxu0 %v493
    %666 = vmatpush1.msra.mxu0 %v492
    %667 = vmatprep.subr.mxu0 %v489
    %668 = vmatpush1.msra.mxu0 %v488
    %669 = vmatprep.subr.mxu0 %v485
    %670 = vmatpush1.msra.mxu0 %v484
    %671 = vmatprep.subr.mxu0 %v481
    %672 = vmatpush1.msra.mxu0 %v480
    %673 = vmatprep.subr.mxu0 %v477
    %674 = vmatpush1.msra.mxu0 %v476
    %675 = vmatprep.subr.mxu0 %v473
    %676 = vmatpush1.msra.mxu0 %v472
    %677 = vmatprep.subr.mxu0 %v469
    %678 = vmatpush1.msra.mxu0 %v468
    %679 = vmatprep.subr.mxu0 %v465
    %680 = vmatpush1.msra.mxu0 %v464
    %681 = vmatprep.subr.mxu0 %v461
    %682 = vmatpush1.msra.mxu0 %v460
    %683 = vmatprep.subr.mxu0 %v457
    %684 = vmatpush1.msra.mxu0 %v456
    %685 = vmatprep.subr.mxu0 %v581
    %686 = vmatpush2.msra.mxu0 %v580
    %687 = vmatprep.subr.mxu0 %v577
    %688 = vmatpush2.msra.mxu0 %v576
    %689 = vmatprep.subr.mxu0 %v573
    %690 = vmatpush2.msra.mxu0 %v572
    %691 = vmatprep.subr.mxu0 %v569
    %692 = vmatpush2.msra.mxu0 %v568
    %693 = vmatprep.subr.mxu0 %v565
    %694 = vmatpush2.msra.mxu0 %v564
    %695 = vmatprep.subr.mxu0 %v561
    %696 = vmatpush2.msra.mxu0 %v560
    %697 = vmatprep.subr.mxu0 %v557
    %698 = vmatpush2.msra.mxu0 %v556
    %699 = vmatprep.subr.mxu0 %v553
    %700 = vmatpush2.msra.mxu0 %v552
    %701 = vmatprep.subr.mxu0 %v549
    %702 = vmatpush2.msra.mxu0 %v548
    %703 = vmatprep.subr.mxu0 %v545
    %704 = vmatpush2.msra.mxu0 %v544
    %705 = vmatprep.subr.mxu0 %v541
    %706 = vmatpush2.msra.mxu0 %v540
    %707 = vmatprep.subr.mxu0 %v537
    %708 = vmatpush2.msra.mxu0 %v536
    %709 = vmatprep.subr.mxu0 %v533
    %710 = vmatpush2.msra.mxu0 %v532
    %711 = vmatprep.subr.mxu0 %v529
    %712 = vmatpush2.msra.mxu0 %v528
    %713 = vmatprep.subr.mxu0 %v525
    %714 = vmatpush2.msra.mxu0 %v524
    %715 = vmatprep.subr.mxu0 %v521
    %716 = vmatpush2.msra.mxu0 %v520
    %717 = vmatprep.mubr.f32.mxu0 %v388
    %718 = vmatmul.mubr.f32.gmra.mxu0 %v387
    %v719 = vpop.f32.mrf.mxu0
    %v720 = vadd.f32 0.0, %v719
    %v721 = vpop.f32.mrf.mxu0
    %v722 = vadd.f32 0.0, %v721
    %723 = vdwg.mxu0
    %v726 = vrot.slane %v720, 2
    %v727 = vrot.slane %v722, 2
    %v730 = vsub.f32 %v649, %v726
    %v731 = vsub.f32 %v651, %v727
    %v734 = vrot.slane %v649, 2
    %v735 = vrot.slane %v651, 2
    %v738 = vadd.f32 %v720, %v734
    %v739 = vadd.f32 %v722, %v735
    %v742 = vrot.slane %v738, 6
    %v743 = vrot.slane %v739, 6
    %v746 = vsel %vm386, %v730, %v742
    %v747 = vsel %vm386, %v731, %v743
    %s748 = scalar_lea.vmem [#allocation2], 1024
    %v749 = vld [vmem:[%s748] sm:$0xff]
    %v750 = vld [vmem:[%s748 + $0x8] sm:$0xff]
    %v751 = vld [vmem:[%s748 + $0x10] sm:$0xff]
    %v752 = vld [vmem:[%s748 + $0x18] sm:$0xff]
    %v753 = vld [vmem:[%s748 + $0x20] sm:$0xff]
    %v754 = vld [vmem:[%s748 + $0x28] sm:$0xff]
    %v755 = vld [vmem:[%s748 + $0x30] sm:$0xff]
    %v756 = vld [vmem:[%s748 + $0x38] sm:$0xff]
    %v757 = vld [vmem:[%s748 + $0x40] sm:$0xff]
    %v758 = vld [vmem:[%s748 + $0x48] sm:$0xff]
    %v759 = vld [vmem:[%s748 + $0x50] sm:$0xff]
    %v760 = vld [vmem:[%s748 + $0x58] sm:$0xff]
    %v761 = vld [vmem:[%s748 + $0x60] sm:$0xff]
    %v762 = vld [vmem:[%s748 + $0x68] sm:$0xff]
    %v763 = vld [vmem:[%s748 + $0x70] sm:$0xff]
    %v764 = vld [vmem:[%s748 + $0x78] sm:$0xff]
    %v765 = vld [vmem:[%s748 + $0x80] sm:$0xff]
    %v766 = vld [vmem:[%s748 + $0x88] sm:$0xff]
    %v767 = vld [vmem:[%s748 + $0x90] sm:$0xff]
    %v768 = vld [vmem:[%s748 + $0x98] sm:$0xff]
    %v769 = vld [vmem:[%s748 + $0xa0] sm:$0xff]
    %v770 = vld [vmem:[%s748 + $0xa8] sm:$0xff]
    %v771 = vld [vmem:[%s748 + $0xb0] sm:$0xff]
    %v772 = vld [vmem:[%s748 + $0xb8] sm:$0xff]
    %v773 = vld [vmem:[%s748 + $0xc0] sm:$0xff]
    %v774 = vld [vmem:[%s748 + $0xc8] sm:$0xff]
    %v775 = vld [vmem:[%s748 + $0xd0] sm:$0xff]
    %v776 = vld [vmem:[%s748 + $0xd8] sm:$0xff]
    %v777 = vld [vmem:[%s748 + $0xe0] sm:$0xff]
    %v778 = vld [vmem:[%s748 + $0xe8] sm:$0xff]
    %v779 = vld [vmem:[%s748 + $0xf0] sm:$0xff]
    %v780 = vld [vmem:[%s748 + $0xf8] sm:$0xff]
    %v781 = vld [vmem:[%s748 + $0x100] sm:$0xff]
    %v782 = vld [vmem:[%s748 + $0x108] sm:$0xff]
    %v783 = vld [vmem:[%s748 + $0x110] sm:$0xff]
    %v784 = vld [vmem:[%s748 + $0x118] sm:$0xff]
    %v785 = vld [vmem:[%s748 + $0x120] sm:$0xff]
    %v786 = vld [vmem:[%s748 + $0x128] sm:$0xff]
    %v787 = vld [vmem:[%s748 + $0x130] sm:$0xff]
    %v788 = vld [vmem:[%s748 + $0x138] sm:$0xff]
    %v789 = vld [vmem:[%s748 + $0x140] sm:$0xff]
    %v790 = vld [vmem:[%s748 + $0x148] sm:$0xff]
    %v791 = vld [vmem:[%s748 + $0x150] sm:$0xff]
    %v792 = vld [vmem:[%s748 + $0x158] sm:$0xff]
    %v793 = vld [vmem:[%s748 + $0x160] sm:$0xff]
    %v794 = vld [vmem:[%s748 + $0x168] sm:$0xff]
    %v795 = vld [vmem:[%s748 + $0x170] sm:$0xff]
    %v796 = vld [vmem:[%s748 + $0x178] sm:$0xff]
    %v797 = vld [vmem:[%s748 + $0x180] sm:$0xff]
    %v798 = vld [vmem:[%s748 + $0x188] sm:$0xff]
    %v799 = vld [vmem:[%s748 + $0x190] sm:$0xff]
    %v800 = vld [vmem:[%s748 + $0x198] sm:$0xff]
    %v801 = vld [vmem:[%s748 + $0x1a0] sm:$0xff]
    %v802 = vld [vmem:[%s748 + $0x1a8] sm:$0xff]
    %v803 = vld [vmem:[%s748 + $0x1b0] sm:$0xff]
    %v804 = vld [vmem:[%s748 + $0x1b8] sm:$0xff]
    %v805 = vld [vmem:[%s748 + $0x1c0] sm:$0xff]
    %v806 = vld [vmem:[%s748 + $0x1c8] sm:$0xff]
    %v807 = vld [vmem:[%s748 + $0x1d0] sm:$0xff]
    %v808 = vld [vmem:[%s748 + $0x1d8] sm:$0xff]
    %v809 = vld [vmem:[%s748 + $0x1e0] sm:$0xff]
    %v810 = vld [vmem:[%s748 + $0x1e8] sm:$0xff]
    %v811 = vld [vmem:[%s748 + $0x1f0] sm:$0xff]
    %v812 = vld [vmem:[%s748 + $0x1f8] sm:$0xff]
    %v813 = vunpack.c.l.bf16 %v749
    %v814 = vunpack.c.h.bf16 %v749
    %v815 = vunpack.c.l.bf16 %v750
    %v816 = vunpack.c.h.bf16 %v750
    %v817 = vunpack.c.l.bf16 %v751
    %v818 = vunpack.c.h.bf16 %v751
    %v819 = vunpack.c.l.bf16 %v752
    %v820 = vunpack.c.h.bf16 %v752
    %v821 = vunpack.c.l.bf16 %v753
    %v822 = vunpack.c.h.bf16 %v753
    %v823 = vunpack.c.l.bf16 %v754
    %v824 = vunpack.c.h.bf16 %v754
    %v825 = vunpack.c.l.bf16 %v755
    %v826 = vunpack.c.h.bf16 %v755
    %v827 = vunpack.c.l.bf16 %v756
    %v828 = vunpack.c.h.bf16 %v756
    %v829 = vunpack.c.l.bf16 %v757
    %v830 = vunpack.c.h.bf16 %v757
    %v831 = vunpack.c.l.bf16 %v758
    %v832 = vunpack.c.h.bf16 %v758
    %v833 = vunpack.c.l.bf16 %v759
    %v834 = vunpack.c.h.bf16 %v759
    %v835 = vunpack.c.l.bf16 %v760
    %v836 = vunpack.c.h.bf16 %v760
    %v837 = vunpack.c.l.bf16 %v761
    %v838 = vunpack.c.h.bf16 %v761
    %v839 = vunpack.c.l.bf16 %v762
    %v840 = vunpack.c.h.bf16 %v762
    %v841 = vunpack.c.l.bf16 %v763
    %v842 = vunpack.c.h.bf16 %v763
    %v843 = vunpack.c.l.bf16 %v764
    %v844 = vunpack.c.h.bf16 %v764
    %v845 = vunpack.c.l.bf16 %v765
    %v846 = vunpack.c.h.bf16 %v765
    %v847 = vunpack.c.l.bf16 %v766
    %v848 = vunpack.c.h.bf16 %v766
    %v849 = vunpack.c.l.bf16 %v767
    %v850 = vunpack.c.h.bf16 %v767
    %v851 = vunpack.c.l.bf16 %v768
    %v852 = vunpack.c.h.bf16 %v768
    %v853 = vunpack.c.l.bf16 %v769
    %v854 = vunpack.c.h.bf16 %v769
    %v855 = vunpack.c.l.bf16 %v770
    %v856 = vunpack.c.h.bf16 %v770
    %v857 = vunpack.c.l.bf16 %v771
    %v858 = vunpack.c.h.bf16 %v771
    %v859 = vunpack.c.l.bf16 %v772
    %v860 = vunpack.c.h.bf16 %v772
    %v861 = vunpack.c.l.bf16 %v773
    %v862 = vunpack.c.h.bf16 %v773
    %v863 = vunpack.c.l.bf16 %v774
    %v864 = vunpack.c.h.bf16 %v774
    %v865 = vunpack.c.l.bf16 %v775
    %v866 = vunpack.c.h.bf16 %v775
    %v867 = vunpack.c.l.bf16 %v776
    %v868 = vunpack.c.h.bf16 %v776
    %v869 = vunpack.c.l.bf16 %v777
    %v870 = vunpack.c.h.bf16 %v777
    %v871 = vunpack.c.l.bf16 %v778
    %v872 = vunpack.c.h.bf16 %v778
    %v873 = vunpack.c.l.bf16 %v779
    %v874 = vunpack.c.h.bf16 %v779
    %v875 = vunpack.c.l.bf16 %v780
    %v876 = vunpack.c.h.bf16 %v780
    %v877 = vunpack.c.l.bf16 %v781
    %v878 = vunpack.c.h.bf16 %v781
    %v879 = vunpack.c.l.bf16 %v782
    %v880 = vunpack.c.h.bf16 %v782
    %v881 = vunpack.c.l.bf16 %v783
    %v882 = vunpack.c.h.bf16 %v783
    %v883 = vunpack.c.l.bf16 %v784
    %v884 = vunpack.c.h.bf16 %v784
    %v885 = vunpack.c.l.bf16 %v785
    %v886 = vunpack.c.h.bf16 %v785
    %v887 = vunpack.c.l.bf16 %v786
    %v888 = vunpack.c.h.bf16 %v786
    %v889 = vunpack.c.l.bf16 %v787
    %v890 = vunpack.c.h.bf16 %v787
    %v891 = vunpack.c.l.bf16 %v788
    %v892 = vunpack.c.h.bf16 %v788
    %v893 = vunpack.c.l.bf16 %v789
    %v894 = vunpack.c.h.bf16 %v789
    %v895 = vunpack.c.l.bf16 %v790
    %v896 = vunpack.c.h.bf16 %v790
    %v897 = vunpack.c.l.bf16 %v791
    %v898 = vunpack.c.h.bf16 %v791
    %v899 = vunpack.c.l.bf16 %v792
    %v900 = vunpack.c.h.bf16 %v792
    %v901 = vunpack.c.l.bf16 %v793
    %v902 = vunpack.c.h.bf16 %v793
    %v903 = vunpack.c.l.bf16 %v794
    %v904 = vunpack.c.h.bf16 %v794
    %v905 = vunpack.c.l.bf16 %v795
    %v906 = vunpack.c.h.bf16 %v795
    %v907 = vunpack.c.l.bf16 %v796
    %v908 = vunpack.c.h.bf16 %v796
    %v909 = vunpack.c.l.bf16 %v797
    %v910 = vunpack.c.h.bf16 %v797
    %v911 = vunpack.c.l.bf16 %v798
    %v912 = vunpack.c.h.bf16 %v798
    %v913 = vunpack.c.l.bf16 %v799
    %v914 = vunpack.c.h.bf16 %v799
    %v915 = vunpack.c.l.bf16 %v800
    %v916 = vunpack.c.h.bf16 %v800
    %v917 = vunpack.c.l.bf16 %v801
    %v918 = vunpack.c.h.bf16 %v801
    %v919 = vunpack.c.l.bf16 %v802
    %v920 = vunpack.c.h.bf16 %v802
    %v921 = vunpack.c.l.bf16 %v803
    %v922 = vunpack.c.h.bf16 %v803
    %v923 = vunpack.c.l.bf16 %v804
    %v924 = vunpack.c.h.bf16 %v804
    %v925 = vunpack.c.l.bf16 %v805
    %v926 = vunpack.c.h.bf16 %v805
    %v927 = vunpack.c.l.bf16 %v806
    %v928 = vunpack.c.h.bf16 %v806
    %v929 = vunpack.c.l.bf16 %v807
    %v930 = vunpack.c.h.bf16 %v807
    %v931 = vunpack.c.l.bf16 %v808
    %v932 = vunpack.c.h.bf16 %v808
    %v933 = vunpack.c.l.bf16 %v809
    %v934 = vunpack.c.h.bf16 %v809
    %v935 = vunpack.c.l.bf16 %v810
    %v936 = vunpack.c.h.bf16 %v810
    %v937 = vunpack.c.l.bf16 %v811
    %v938 = vunpack.c.h.bf16 %v811
    %v939 = vunpack.c.l.bf16 %v812
    %v940 = vunpack.c.h.bf16 %v812
    %941 = vmatprep.subr.mxu0 %v874
    %942 = vmatpush1.msra.mxu0 %v873
    %943 = vmatprep.subr.mxu0 %v870
    %944 = vmatpush1.msra.mxu0 %v869
    %945 = vmatprep.subr.mxu0 %v866
    %946 = vmatpush1.msra.mxu0 %v865
    %947 = vmatprep.subr.mxu0 %v862
    %948 = vmatpush1.msra.mxu0 %v861
    %949 = vmatprep.subr.mxu0 %v858
    %950 = vmatpush1.msra.mxu0 %v857
    %951 = vmatprep.subr.mxu0 %v854
    %952 = vmatpush1.msra.mxu0 %v853
    %953 = vmatprep.subr.mxu0 %v850
    %954 = vmatpush1.msra.mxu0 %v849
    %955 = vmatprep.subr.mxu0 %v846
    %956 = vmatpush1.msra.mxu0 %v845
    %957 = vmatprep.subr.mxu0 %v842
    %958 = vmatpush1.msra.mxu0 %v841
    %959 = vmatprep.subr.mxu0 %v838
    %960 = vmatpush1.msra.mxu0 %v837
    %961 = vmatprep.subr.mxu0 %v834
    %962 = vmatpush1.msra.mxu0 %v833
    %963 = vmatprep.subr.mxu0 %v830
    %964 = vmatpush1.msra.mxu0 %v829
    %965 = vmatprep.subr.mxu0 %v826
    %966 = vmatpush1.msra.mxu0 %v825
    %967 = vmatprep.subr.mxu0 %v822
    %968 = vmatpush1.msra.mxu0 %v821
    %969 = vmatprep.subr.mxu0 %v818
    %970 = vmatpush1.msra.mxu0 %v817
    %971 = vmatprep.subr.mxu0 %v814
    %972 = vmatpush1.msra.mxu0 %v813
    %973 = vmatprep.subr.mxu0 %v938
    %974 = vmatpush2.msra.mxu0 %v937
    %975 = vmatprep.subr.mxu0 %v934
    %976 = vmatpush2.msra.mxu0 %v933
    %977 = vmatprep.subr.mxu0 %v930
    %978 = vmatpush2.msra.mxu0 %v929
    %979 = vmatprep.subr.mxu0 %v926
    %980 = vmatpush2.msra.mxu0 %v925
    %981 = vmatprep.subr.mxu0 %v922
    %982 = vmatpush2.msra.mxu0 %v921
    %983 = vmatprep.subr.mxu0 %v918
    %984 = vmatpush2.msra.mxu0 %v917
    %985 = vmatprep.subr.mxu0 %v914
    %986 = vmatpush2.msra.mxu0 %v913
    %987 = vmatprep.subr.mxu0 %v910
    %988 = vmatpush2.msra.mxu0 %v909
    %989 = vmatprep.subr.mxu0 %v906
    %990 = vmatpush2.msra.mxu0 %v905
    %991 = vmatprep.subr.mxu0 %v902
    %992 = vmatpush2.msra.mxu0 %v901
    %993 = vmatprep.subr.mxu0 %v898
    %994 = vmatpush2.msra.mxu0 %v897
    %995 = vmatprep.subr.mxu0 %v894
    %996 = vmatpush2.msra.mxu0 %v893
    %997 = vmatprep.subr.mxu0 %v890
    %998 = vmatpush2.msra.mxu0 %v889
    %999 = vmatprep.subr.mxu0 %v886
    %1000 = vmatpush2.msra.mxu0 %v885
    %1001 = vmatprep.subr.mxu0 %v882
    %1002 = vmatpush2.msra.mxu0 %v881
    %1003 = vmatprep.subr.mxu0 %v878
    %1004 = vmatpush2.msra.mxu0 %v877
    %1005 = vmatprep.mubr.f32.mxu0 %v747
    %1006 = vmatmul.mubr.f32.gmra.mxu0 %v746
    %v1007 = vpop.f32.mrf.mxu0
    %v1008 = vadd.f32 0.0, %v1007
    %v1009 = vpop.f32.mrf.mxu0
    %v1010 = vadd.f32 0.0, %v1009
    %1011 = vdwg.mxu0
    %1012 = vmatprep.subr.mxu0 %v876
    %1013 = vmatpush1.msra.mxu0 %v875
    %1014 = vmatprep.subr.mxu0 %v872
    %1015 = vmatpush1.msra.mxu0 %v871
    %1016 = vmatprep.subr.mxu0 %v868
    %1017 = vmatpush1.msra.mxu0 %v867
    %1018 = vmatprep.subr.mxu0 %v864
    %1019 = vmatpush1.msra.mxu0 %v863
    %1020 = vmatprep.subr.mxu0 %v860
    %1021 = vmatpush1.msra.mxu0 %v859
    %1022 = vmatprep.subr.mxu0 %v856
    %1023 = vmatpush1.msra.mxu0 %v855
    %1024 = vmatprep.subr.mxu0 %v852
    %1025 = vmatpush1.msra.mxu0 %v851
    %1026 = vmatprep.subr.mxu0 %v848
    %1027 = vmatpush1.msra.mxu0 %v847
    %1028 = vmatprep.subr.mxu0 %v844
    %1029 = vmatpush1.msra.mxu0 %v843
    %1030 = vmatprep.subr.mxu0 %v840
    %1031 = vmatpush1.msra.mxu0 %v839
    %1032 = vmatprep.subr.mxu0 %v836
    %1033 = vmatpush1.msra.mxu0 %v835
    %1034 = vmatprep.subr.mxu0 %v832
    %1035 = vmatpush1.msra.mxu0 %v831
    %1036 = vmatprep.subr.mxu0 %v828
    %1037 = vmatpush1.msra.mxu0 %v827
    %1038 = vmatprep.subr.mxu0 %v824
    %1039 = vmatpush1.msra.mxu0 %v823
    %1040 = vmatprep.subr.mxu0 %v820
    %1041 = vmatpush1.msra.mxu0 %v819
    %1042 = vmatprep.subr.mxu0 %v816
    %1043 = vmatpush1.msra.mxu0 %v815
    %1044 = vmatprep.subr.mxu0 %v940
    %1045 = vmatpush2.msra.mxu0 %v939
    %1046 = vmatprep.subr.mxu0 %v936
    %1047 = vmatpush2.msra.mxu0 %v935
    %1048 = vmatprep.subr.mxu0 %v932
    %1049 = vmatpush2.msra.mxu0 %v931
    %1050 = vmatprep.subr.mxu0 %v928
    %1051 = vmatpush2.msra.mxu0 %v927
    %1052 = vmatprep.subr.mxu0 %v924
    %1053 = vmatpush2.msra.mxu0 %v923
    %1054 = vmatprep.subr.mxu0 %v920
    %1055 = vmatpush2.msra.mxu0 %v919
    %1056 = vmatprep.subr.mxu0 %v916
    %1057 = vmatpush2.msra.mxu0 %v915
    %1058 = vmatprep.subr.mxu0 %v912
    %1059 = vmatpush2.msra.mxu0 %v911
    %1060 = vmatprep.subr.mxu0 %v908
    %1061 = vmatpush2.msra.mxu0 %v907
    %1062 = vmatprep.subr.mxu0 %v904
    %1063 = vmatpush2.msra.mxu0 %v903
    %1064 = vmatprep.subr.mxu0 %v900
    %1065 = vmatpush2.msra.mxu0 %v899
    %1066 = vmatprep.subr.mxu0 %v896
    %1067 = vmatpush2.msra.mxu0 %v895
    %1068 = vmatprep.subr.mxu0 %v892
    %1069 = vmatpush2.msra.mxu0 %v891
    %1070 = vmatprep.subr.mxu0 %v888
    %1071 = vmatpush2.msra.mxu0 %v887
    %1072 = vmatprep.subr.mxu0 %v884
    %1073 = vmatpush2.msra.mxu0 %v883
    %1074 = vmatprep.subr.mxu0 %v880
    %1075 = vmatpush2.msra.mxu0 %v879
    %1076 = vmatprep.mubr.f32.mxu0 %v747
    %1077 = vmatmul.mubr.f32.gmra.mxu0 %v746
    %v1078 = vpop.f32.mrf.mxu0
    %v1079 = vadd.f32 0.0, %v1078
    %v1080 = vpop.f32.mrf.mxu0
    %v1081 = vadd.f32 0.0, %v1080
    %1082 = vdwg.mxu0
    %v1085 = vrot.slane %v1079, 2
    %v1086 = vrot.slane %v1081, 2
    %v1089 = vsub.f32 %v1008, %v1085
    %v1090 = vsub.f32 %v1010, %v1086
    %v1093 = vrot.slane %v1008, 2
    %v1094 = vrot.slane %v1010, 2
    %v1097 = vadd.f32 %v1079, %v1093
    %v1098 = vadd.f32 %v1081, %v1094
    %v1101 = vrot.slane %v1097, 6
    %v1102 = vrot.slane %v1098, 6
    %v1105 = vsel %vm386, %v1089, %v1101
    %v1106 = vsel %vm386, %v1090, %v1102
    %s1107 = scalar_lea.vmem [#allocation2], 1536
    %v1108 = vld [vmem:[%s1107] sm:$0xff]
    %v1109 = vld [vmem:[%s1107 + $0x8] sm:$0xff]
    %v1110 = vld [vmem:[%s1107 + $0x10] sm:$0xff]
    %v1111 = vld [vmem:[%s1107 + $0x18] sm:$0xff]
    %v1112 = vld [vmem:[%s1107 + $0x20] sm:$0xff]
    %v1113 = vld [vmem:[%s1107 + $0x28] sm:$0xff]
    %v1114 = vld [vmem:[%s1107 + $0x30] sm:$0xff]
    %v1115 = vld [vmem:[%s1107 + $0x38] sm:$0xff]
    %v1116 = vld [vmem:[%s1107 + $0x40] sm:$0xff]
    %v1117 = vld [vmem:[%s1107 + $0x48] sm:$0xff]
    %v1118 = vld [vmem:[%s1107 + $0x50] sm:$0xff]
    %v1119 = vld [vmem:[%s1107 + $0x58] sm:$0xff]
    %v1120 = vld [vmem:[%s1107 + $0x60] sm:$0xff]
    %v1121 = vld [vmem:[%s1107 + $0x68] sm:$0xff]
    %v1122 = vld [vmem:[%s1107 + $0x70] sm:$0xff]
    %v1123 = vld [vmem:[%s1107 + $0x78] sm:$0xff]
    %v1124 = vld [vmem:[%s1107 + $0x80] sm:$0xff]
    %v1125 = vld [vmem:[%s1107 + $0x88] sm:$0xff]
    %v1126 = vld [vmem:[%s1107 + $0x90] sm:$0xff]
    %v1127 = vld [vmem:[%s1107 + $0x98] sm:$0xff]
    %v1128 = vld [vmem:[%s1107 + $0xa0] sm:$0xff]
    %v1129 = vld [vmem:[%s1107 + $0xa8] sm:$0xff]
    %v1130 = vld [vmem:[%s1107 + $0xb0] sm:$0xff]
    %v1131 = vld [vmem:[%s1107 + $0xb8] sm:$0xff]
    %v1132 = vld [vmem:[%s1107 + $0xc0] sm:$0xff]
    %v1133 = vld [vmem:[%s1107 + $0xc8] sm:$0xff]
    %v1134 = vld [vmem:[%s1107 + $0xd0] sm:$0xff]
    %v1135 = vld [vmem:[%s1107 + $0xd8] sm:$0xff]
    %v1136 = vld [vmem:[%s1107 + $0xe0] sm:$0xff]
    %v1137 = vld [vmem:[%s1107 + $0xe8] sm:$0xff]
    %v1138 = vld [vmem:[%s1107 + $0xf0] sm:$0xff]
    %v1139 = vld [vmem:[%s1107 + $0xf8] sm:$0xff]
    %v1140 = vld [vmem:[%s1107 + $0x100] sm:$0xff]
    %v1141 = vld [vmem:[%s1107 + $0x108] sm:$0xff]
    %v1142 = vld [vmem:[%s1107 + $0x110] sm:$0xff]
    %v1143 = vld [vmem:[%s1107 + $0x118] sm:$0xff]
    %v1144 = vld [vmem:[%s1107 + $0x120] sm:$0xff]
    %v1145 = vld [vmem:[%s1107 + $0x128] sm:$0xff]
    %v1146 = vld [vmem:[%s1107 + $0x130] sm:$0xff]
    %v1147 = vld [vmem:[%s1107 + $0x138] sm:$0xff]
    %v1148 = vld [vmem:[%s1107 + $0x140] sm:$0xff]
    %v1149 = vld [vmem:[%s1107 + $0x148] sm:$0xff]
    %v1150 = vld [vmem:[%s1107 + $0x150] sm:$0xff]
    %v1151 = vld [vmem:[%s1107 + $0x158] sm:$0xff]
    %v1152 = vld [vmem:[%s1107 + $0x160] sm:$0xff]
    %v1153 = vld [vmem:[%s1107 + $0x168] sm:$0xff]
    %v1154 = vld [vmem:[%s1107 + $0x170] sm:$0xff]
    %v1155 = vld [vmem:[%s1107 + $0x178] sm:$0xff]
    %v1156 = vld [vmem:[%s1107 + $0x180] sm:$0xff]
    %v1157 = vld [vmem:[%s1107 + $0x188] sm:$0xff]
    %v1158 = vld [vmem:[%s1107 + $0x190] sm:$0xff]
    %v1159 = vld [vmem:[%s1107 + $0x198] sm:$0xff]
    %v1160 = vld [vmem:[%s1107 + $0x1a0] sm:$0xff]
    %v1161 = vld [vmem:[%s1107 + $0x1a8] sm:$0xff]
    %v1162 = vld [vmem:[%s1107 + $0x1b0] sm:$0xff]
    %v1163 = vld [vmem:[%s1107 + $0x1b8] sm:$0xff]
    %v1164 = vld [vmem:[%s1107 + $0x1c0] sm:$0xff]
    %v1165 = vld [vmem:[%s1107 + $0x1c8] sm:$0xff]
    %v1166 = vld [vmem:[%s1107 + $0x1d0] sm:$0xff]
    %v1167 = vld [vmem:[%s1107 + $0x1d8] sm:$0xff]
    %v1168 = vld [vmem:[%s1107 + $0x1e0] sm:$0xff]
    %v1169 = vld [vmem:[%s1107 + $0x1e8] sm:$0xff]
    %v1170 = vld [vmem:[%s1107 + $0x1f0] sm:$0xff]
    %v1171 = vld [vmem:[%s1107 + $0x1f8] sm:$0xff]
    %v1172 = vunpack.c.l.bf16 %v1108
    %v1173 = vunpack.c.h.bf16 %v1108
    %v1174 = vunpack.c.l.bf16 %v1109
    %v1175 = vunpack.c.h.bf16 %v1109
    %v1176 = vunpack.c.l.bf16 %v1110
    %v1177 = vunpack.c.h.bf16 %v1110
    %v1178 = vunpack.c.l.bf16 %v1111
    %v1179 = vunpack.c.h.bf16 %v1111
    %v1180 = vunpack.c.l.bf16 %v1112
    %v1181 = vunpack.c.h.bf16 %v1112
    %v1182 = vunpack.c.l.bf16 %v1113
    %v1183 = vunpack.c.h.bf16 %v1113
    %v1184 = vunpack.c.l.bf16 %v1114
    %v1185 = vunpack.c.h.bf16 %v1114
    %v1186 = vunpack.c.l.bf16 %v1115
    %v1187 = vunpack.c.h.bf16 %v1115
    %v1188 = vunpack.c.l.bf16 %v1116
    %v1189 = vunpack.c.h.bf16 %v1116
    %v1190 = vunpack.c.l.bf16 %v1117
    %v1191 = vunpack.c.h.bf16 %v1117
    %v1192 = vunpack.c.l.bf16 %v1118
    %v1193 = vunpack.c.h.bf16 %v1118
    %v1194 = vunpack.c.l.bf16 %v1119
    %v1195 = vunpack.c.h.bf16 %v1119
    %v1196 = vunpack.c.l.bf16 %v1120
    %v1197 = vunpack.c.h.bf16 %v1120
    %v1198 = vunpack.c.l.bf16 %v1121
    %v1199 = vunpack.c.h.bf16 %v1121
    %v1200 = vunpack.c.l.bf16 %v1122
    %v1201 = vunpack.c.h.bf16 %v1122
    %v1202 = vunpack.c.l.bf16 %v1123
    %v1203 = vunpack.c.h.bf16 %v1123
    %v1204 = vunpack.c.l.bf16 %v1124
    %v1205 = vunpack.c.h.bf16 %v1124
    %v1206 = vunpack.c.l.bf16 %v1125
    %v1207 = vunpack.c.h.bf16 %v1125
    %v1208 = vunpack.c.l.bf16 %v1126
    %v1209 = vunpack.c.h.bf16 %v1126
    %v1210 = vunpack.c.l.bf16 %v1127
    %v1211 = vunpack.c.h.bf16 %v1127
    %v1212 = vunpack.c.l.bf16 %v1128
    %v1213 = vunpack.c.h.bf16 %v1128
    %v1214 = vunpack.c.l.bf16 %v1129
    %v1215 = vunpack.c.h.bf16 %v1129
    %v1216 = vunpack.c.l.bf16 %v1130
    %v1217 = vunpack.c.h.bf16 %v1130
    %v1218 = vunpack.c.l.bf16 %v1131
    %v1219 = vunpack.c.h.bf16 %v1131
    %v1220 = vunpack.c.l.bf16 %v1132
    %v1221 = vunpack.c.h.bf16 %v1132
    %v1222 = vunpack.c.l.bf16 %v1133
    %v1223 = vunpack.c.h.bf16 %v1133
    %v1224 = vunpack.c.l.bf16 %v1134
    %v1225 = vunpack.c.h.bf16 %v1134
    %v1226 = vunpack.c.l.bf16 %v1135
    %v1227 = vunpack.c.h.bf16 %v1135
    %v1228 = vunpack.c.l.bf16 %v1136
    %v1229 = vunpack.c.h.bf16 %v1136
    %v1230 = vunpack.c.l.bf16 %v1137
    %v1231 = vunpack.c.h.bf16 %v1137
    %v1232 = vunpack.c.l.bf16 %v1138
    %v1233 = vunpack.c.h.bf16 %v1138
    %v1234 = vunpack.c.l.bf16 %v1139
    %v1235 = vunpack.c.h.bf16 %v1139
    %v1236 = vunpack.c.l.bf16 %v1140
    %v1237 = vunpack.c.h.bf16 %v1140
    %v1238 = vunpack.c.l.bf16 %v1141
    %v1239 = vunpack.c.h.bf16 %v1141
    %v1240 = vunpack.c.l.bf16 %v1142
    %v1241 = vunpack.c.h.bf16 %v1142
    %v1242 = vunpack.c.l.bf16 %v1143
    %v1243 = vunpack.c.h.bf16 %v1143
    %v1244 = vunpack.c.l.bf16 %v1144
    %v1245 = vunpack.c.h.bf16 %v1144
    %v1246 = vunpack.c.l.bf16 %v1145
    %v1247 = vunpack.c.h.bf16 %v1145
    %v1248 = vunpack.c.l.bf16 %v1146
    %v1249 = vunpack.c.h.bf16 %v1146
    %v1250 = vunpack.c.l.bf16 %v1147
    %v1251 = vunpack.c.h.bf16 %v1147
    %v1252 = vunpack.c.l.bf16 %v1148
    %v1253 = vunpack.c.h.bf16 %v1148
    %v1254 = vunpack.c.l.bf16 %v1149
    %v1255 = vunpack.c.h.bf16 %v1149
    %v1256 = vunpack.c.l.bf16 %v1150
    %v1257 = vunpack.c.h.bf16 %v1150
    %v1258 = vunpack.c.l.bf16 %v1151
    %v1259 = vunpack.c.h.bf16 %v1151
    %v1260 = vunpack.c.l.bf16 %v1152
    %v1261 = vunpack.c.h.bf16 %v1152
    %v1262 = vunpack.c.l.bf16 %v1153
    %v1263 = vunpack.c.h.bf16 %v1153
    %v1264 = vunpack.c.l.bf16 %v1154
    %v1265 = vunpack.c.h.bf16 %v1154
    %v1266 = vunpack.c.l.bf16 %v1155
    %v1267 = vunpack.c.h.bf16 %v1155
    %v1268 = vunpack.c.l.bf16 %v1156
    %v1269 = vunpack.c.h.bf16 %v1156
    %v1270 = vunpack.c.l.bf16 %v1157
    %v1271 = vunpack.c.h.bf16 %v1157
    %v1272 = vunpack.c.l.bf16 %v1158
    %v1273 = vunpack.c.h.bf16 %v1158
    %v1274 = vunpack.c.l.bf16 %v1159
    %v1275 = vunpack.c.h.bf16 %v1159
    %v1276 = vunpack.c.l.bf16 %v1160
    %v1277 = vunpack.c.h.bf16 %v1160
    %v1278 = vunpack.c.l.bf16 %v1161
    %v1279 = vunpack.c.h.bf16 %v1161
    %v1280 = vunpack.c.l.bf16 %v1162
    %v1281 = vunpack.c.h.bf16 %v1162
    %v1282 = vunpack.c.l.bf16 %v1163
    %v1283 = vunpack.c.h.bf16 %v1163
    %v1284 = vunpack.c.l.bf16 %v1164
    %v1285 = vunpack.c.h.bf16 %v1164
    %v1286 = vunpack.c.l.bf16 %v1165
    %v1287 = vunpack.c.h.bf16 %v1165
    %v1288 = vunpack.c.l.bf16 %v1166
    %v1289 = vunpack.c.h.bf16 %v1166
    %v1290 = vunpack.c.l.bf16 %v1167
    %v1291 = vunpack.c.h.bf16 %v1167
    %v1292 = vunpack.c.l.bf16 %v1168
    %v1293 = vunpack.c.h.bf16 %v1168
    %v1294 = vunpack.c.l.bf16 %v1169
    %v1295 = vunpack.c.h.bf16 %v1169
    %v1296 = vunpack.c.l.bf16 %v1170
    %v1297 = vunpack.c.h.bf16 %v1170
    %v1298 = vunpack.c.l.bf16 %v1171
    %v1299 = vunpack.c.h.bf16 %v1171
    %1300 = vmatprep.subr.mxu0 %v1233
    %1301 = vmatpush1.msra.mxu0 %v1232
    %1302 = vmatprep.subr.mxu0 %v1229
    %1303 = vmatpush1.msra.mxu0 %v1228
    %1304 = vmatprep.subr.mxu0 %v1225
    %1305 = vmatpush1.msra.mxu0 %v1224
    %1306 = vmatprep.subr.mxu0 %v1221
    %1307 = vmatpush1.msra.mxu0 %v1220
    %1308 = vmatprep.subr.mxu0 %v1217
    %1309 = vmatpush1.msra.mxu0 %v1216
    %1310 = vmatprep.subr.mxu0 %v1213
    %1311 = vmatpush1.msra.mxu0 %v1212
    %1312 = vmatprep.subr.mxu0 %v1209
    %1313 = vmatpush1.msra.mxu0 %v1208
    %1314 = vmatprep.subr.mxu0 %v1205
    %1315 = vmatpush1.msra.mxu0 %v1204
    %1316 = vmatprep.subr.mxu0 %v1201
    %1317 = vmatpush1.msra.mxu0 %v1200
    %1318 = vmatprep.subr.mxu0 %v1197
    %1319 = vmatpush1.msra.mxu0 %v1196
    %1320 = vmatprep.subr.mxu0 %v1193
    %1321 = vmatpush1.msra.mxu0 %v1192
    %1322 = vmatprep.subr.mxu0 %v1189
    %1323 = vmatpush1.msra.mxu0 %v1188
    %1324 = vmatprep.subr.mxu0 %v1185
    %1325 = vmatpush1.msra.mxu0 %v1184
    %1326 = vmatprep.subr.mxu0 %v1181
    %1327 = vmatpush1.msra.mxu0 %v1180
    %1328 = vmatprep.subr.mxu0 %v1177
    %1329 = vmatpush1.msra.mxu0 %v1176
    %1330 = vmatprep.subr.mxu0 %v1173
    %1331 = vmatpush1.msra.mxu0 %v1172
    %1332 = vmatprep.subr.mxu0 %v1297
    %1333 = vmatpush2.msra.mxu0 %v1296
    %1334 = vmatprep.subr.mxu0 %v1293
    %1335 = vmatpush2.msra.mxu0 %v1292
    %1336 = vmatprep.subr.mxu0 %v1289
    %1337 = vmatpush2.msra.mxu0 %v1288
    %1338 = vmatprep.subr.mxu0 %v1285
    %1339 = vmatpush2.msra.mxu0 %v1284
    %1340 = vmatprep.subr.mxu0 %v1281
    %1341 = vmatpush2.msra.mxu0 %v1280
    %1342 = vmatprep.subr.mxu0 %v1277
    %1343 = vmatpush2.msra.mxu0 %v1276
    %1344 = vmatprep.subr.mxu0 %v1273
    %1345 = vmatpush2.msra.mxu0 %v1272
    %1346 = vmatprep.subr.mxu0 %v1269
    %1347 = vmatpush2.msra.mxu0 %v1268
    %1348 = vmatprep.subr.mxu0 %v1265
    %1349 = vmatpush2.msra.mxu0 %v1264
    %1350 = vmatprep.subr.mxu0 %v1261
    %1351 = vmatpush2.msra.mxu0 %v1260
    %1352 = vmatprep.subr.mxu0 %v1257
    %1353 = vmatpush2.msra.mxu0 %v1256
    %1354 = vmatprep.subr.mxu0 %v1253
    %1355 = vmatpush2.msra.mxu0 %v1252
    %1356 = vmatprep.subr.mxu0 %v1249
    %1357 = vmatpush2.msra.mxu0 %v1248
    %1358 = vmatprep.subr.mxu0 %v1245
    %1359 = vmatpush2.msra.mxu0 %v1244
    %1360 = vmatprep.subr.mxu0 %v1241
    %1361 = vmatpush2.msra.mxu0 %v1240
    %1362 = vmatprep.subr.mxu0 %v1237
    %1363 = vmatpush2.msra.mxu0 %v1236
    %1364 = vmatprep.mubr.f32.mxu0 %v1106
    %1365 = vmatmul.mubr.f32.gmra.mxu0 %v1105
    %v1366 = vpop.f32.mrf.mxu0
    %v1367 = vadd.f32 0.0, %v1366
    %v1368 = vpop.f32.mrf.mxu0
    %v1369 = vadd.f32 0.0, %v1368
    %1370 = vdwg.mxu0
    %1371 = vmatprep.subr.mxu0 %v1235
    %1372 = vmatpush1.msra.mxu0 %v1234
    %1373 = vmatprep.subr.mxu0 %v1231
    %1374 = vmatpush1.msra.mxu0 %v1230
    %1375 = vmatprep.subr.mxu0 %v1227
    %1376 = vmatpush1.msra.mxu0 %v1226
    %1377 = vmatprep.subr.mxu0 %v1223
    %1378 = vmatpush1.msra.mxu0 %v1222
    %1379 = vmatprep.subr.mxu0 %v1219
    %1380 = vmatpush1.msra.mxu0 %v1218
    %1381 = vmatprep.subr.mxu0 %v1215
    %1382 = vmatpush1.msra.mxu0 %v1214
    %1383 = vmatprep.subr.mxu0 %v1211
    %1384 = vmatpush1.msra.mxu0 %v1210
    %1385 = vmatprep.subr.mxu0 %v1207
    %1386 = vmatpush1.msra.mxu0 %v1206
    %1387 = vmatprep.subr.mxu0 %v1203
    %1388 = vmatpush1.msra.mxu0 %v1202
    %1389 = vmatprep.subr.mxu0 %v1199
    %1390 = vmatpush1.msra.mxu0 %v1198
    %1391 = vmatprep.subr.mxu0 %v1195
    %1392 = vmatpush1.msra.mxu0 %v1194
    %1393 = vmatprep.subr.mxu0 %v1191
    %1394 = vmatpush1.msra.mxu0 %v1190
    %1395 = vmatprep.subr.mxu0 %v1187
    %1396 = vmatpush1.msra.mxu0 %v1186
    %1397 = vmatprep.subr.mxu0 %v1183
    %1398 = vmatpush1.msra.mxu0 %v1182
    %1399 = vmatprep.subr.mxu0 %v1179
    %1400 = vmatpush1.msra.mxu0 %v1178
    %1401 = vmatprep.subr.mxu0 %v1175
    %1402 = vmatpush1.msra.mxu0 %v1174
    %1403 = vmatprep.subr.mxu0 %v1299
    %1404 = vmatpush2.msra.mxu0 %v1298
    %1405 = vmatprep.subr.mxu0 %v1295
    %1406 = vmatpush2.msra.mxu0 %v1294
    %1407 = vmatprep.subr.mxu0 %v1291
    %1408 = vmatpush2.msra.mxu0 %v1290
    %1409 = vmatprep.subr.mxu0 %v1287
    %1410 = vmatpush2.msra.mxu0 %v1286
    %1411 = vmatprep.subr.mxu0 %v1283
    %1412 = vmatpush2.msra.mxu0 %v1282
    %1413 = vmatprep.subr.mxu0 %v1279
    %1414 = vmatpush2.msra.mxu0 %v1278
    %1415 = vmatprep.subr.mxu0 %v1275
    %1416 = vmatpush2.msra.mxu0 %v1274
    %1417 = vmatprep.subr.mxu0 %v1271
    %1418 = vmatpush2.msra.mxu0 %v1270
    %1419 = vmatprep.subr.mxu0 %v1267
    %1420 = vmatpush2.msra.mxu0 %v1266
    %1421 = vmatprep.subr.mxu0 %v1263
    %1422 = vmatpush2.msra.mxu0 %v1262
    %1423 = vmatprep.subr.mxu0 %v1259
    %1424 = vmatpush2.msra.mxu0 %v1258
    %1425 = vmatprep.subr.mxu0 %v1255
    %1426 = vmatpush2.msra.mxu0 %v1254
    %1427 = vmatprep.subr.mxu0 %v1251
    %1428 = vmatpush2.msra.mxu0 %v1250
    %1429 = vmatprep.subr.mxu0 %v1247
    %1430 = vmatpush2.msra.mxu0 %v1246
    %1431 = vmatprep.subr.mxu0 %v1243
    %1432 = vmatpush2.msra.mxu0 %v1242
    %1433 = vmatprep.subr.mxu0 %v1239
    %1434 = vmatpush2.msra.mxu0 %v1238
    %1435 = vmatprep.mubr.f32.mxu0 %v1106
    %1436 = vmatmul.mubr.f32.gmra.mxu0 %v1105
    %v1437 = vpop.f32.mrf.mxu0
    %v1438 = vadd.f32 0.0, %v1437
    %v1439 = vpop.f32.mrf.mxu0
    %v1440 = vadd.f32 0.0, %v1439
    %1441 = vdwg.mxu0
    %v1444 = vrot.slane %v1438, 2
    %v1445 = vrot.slane %v1440, 2
    %v1448 = vsub.f32 %v1367, %v1444
    %v1449 = vsub.f32 %v1369, %v1445
    %v1452 = vrot.slane %v1367, 2
    %v1453 = vrot.slane %v1369, 2
    %v1456 = vadd.f32 %v1438, %v1452
    %v1457 = vadd.f32 %v1440, %v1453
    %v1460 = vrot.slane %v1456, 6
    %v1461 = vrot.slane %v1457, 6
    %v1464 = vsel %vm386, %v1448, %v1460
    %v1465 = vsel %vm386, %v1449, %v1461
    %s1466 = scalar_lea.vmem [#allocation2], 2048
    %v1467 = vld [vmem:[%s1466] sm:$0xff]
    %v1468 = vld [vmem:[%s1466 + $0x8] sm:$0xff]
    %v1469 = vld [vmem:[%s1466 + $0x10] sm:$0xff]
    %v1470 = vld [vmem:[%s1466 + $0x18] sm:$0xff]
    %v1471 = vld [vmem:[%s1466 + $0x20] sm:$0xff]
    %v1472 = vld [vmem:[%s1466 + $0x28] sm:$0xff]
    %v1473 = vld [vmem:[%s1466 + $0x30] sm:$0xff]
    %v1474 = vld [vmem:[%s1466 + $0x38] sm:$0xff]
    %v1475 = vld [vmem:[%s1466 + $0x40] sm:$0xff]
    %v1476 = vld [vmem:[%s1466 + $0x48] sm:$0xff]
    %v1477 = vld [vmem:[%s1466 + $0x50] sm:$0xff]
    %v1478 = vld [vmem:[%s1466 + $0x58] sm:$0xff]
    %v1479 = vld [vmem:[%s1466 + $0x60] sm:$0xff]
    %v1480 = vld [vmem:[%s1466 + $0x68] sm:$0xff]
    %v1481 = vld [vmem:[%s1466 + $0x70] sm:$0xff]
    %v1482 = vld [vmem:[%s1466 + $0x78] sm:$0xff]
    %v1483 = vld [vmem:[%s1466 + $0x80] sm:$0xff]
    %v1484 = vld [vmem:[%s1466 + $0x88] sm:$0xff]
    %v1485 = vld [vmem:[%s1466 + $0x90] sm:$0xff]
    %v1486 = vld [vmem:[%s1466 + $0x98] sm:$0xff]
    %v1487 = vld [vmem:[%s1466 + $0xa0] sm:$0xff]
    %v1488 = vld [vmem:[%s1466 + $0xa8] sm:$0xff]
    %v1489 = vld [vmem:[%s1466 + $0xb0] sm:$0xff]
    %v1490 = vld [vmem:[%s1466 + $0xb8] sm:$0xff]
    %v1491 = vld [vmem:[%s1466 + $0xc0] sm:$0xff]
    %v1492 = vld [vmem:[%s1466 + $0xc8] sm:$0xff]
    %v1493 = vld [vmem:[%s1466 + $0xd0] sm:$0xff]
    %v1494 = vld [vmem:[%s1466 + $0xd8] sm:$0xff]
    %v1495 = vld [vmem:[%s1466 + $0xe0] sm:$0xff]
    %v1496 = vld [vmem:[%s1466 + $0xe8] sm:$0xff]
    %v1497 = vld [vmem:[%s1466 + $0xf0] sm:$0xff]
    %v1498 = vld [vmem:[%s1466 + $0xf8] sm:$0xff]
    %v1499 = vld [vmem:[%s1466 + $0x100] sm:$0xff]
    %v1500 = vld [vmem:[%s1466 + $0x108] sm:$0xff]
    %v1501 = vld [vmem:[%s1466 + $0x110] sm:$0xff]
    %v1502 = vld [vmem:[%s1466 + $0x118] sm:$0xff]
    %v1503 = vld [vmem:[%s1466 + $0x120] sm:$0xff]
    %v1504 = vld [vmem:[%s1466 + $0x128] sm:$0xff]
    %v1505 = vld [vmem:[%s1466 + $0x130] sm:$0xff]
    %v1506 = vld [vmem:[%s1466 + $0x138] sm:$0xff]
    %v1507 = vld [vmem:[%s1466 + $0x140] sm:$0xff]
    %v1508 = vld [vmem:[%s1466 + $0x148] sm:$0xff]
    %v1509 = vld [vmem:[%s1466 + $0x150] sm:$0xff]
    %v1510 = vld [vmem:[%s1466 + $0x158] sm:$0xff]
    %v1511 = vld [vmem:[%s1466 + $0x160] sm:$0xff]
    %v1512 = vld [vmem:[%s1466 + $0x168] sm:$0xff]
    %v1513 = vld [vmem:[%s1466 + $0x170] sm:$0xff]
    %v1514 = vld [vmem:[%s1466 + $0x178] sm:$0xff]
    %v1515 = vld [vmem:[%s1466 + $0x180] sm:$0xff]
    %v1516 = vld [vmem:[%s1466 + $0x188] sm:$0xff]
    %v1517 = vld [vmem:[%s1466 + $0x190] sm:$0xff]
    %v1518 = vld [vmem:[%s1466 + $0x198] sm:$0xff]
    %v1519 = vld [vmem:[%s1466 + $0x1a0] sm:$0xff]
    %v1520 = vld [vmem:[%s1466 + $0x1a8] sm:$0xff]
    %v1521 = vld [vmem:[%s1466 + $0x1b0] sm:$0xff]
    %v1522 = vld [vmem:[%s1466 + $0x1b8] sm:$0xff]
    %v1523 = vld [vmem:[%s1466 + $0x1c0] sm:$0xff]
    %v1524 = vld [vmem:[%s1466 + $0x1c8] sm:$0xff]
    %v1525 = vld [vmem:[%s1466 + $0x1d0] sm:$0xff]
    %v1526 = vld [vmem:[%s1466 + $0x1d8] sm:$0xff]
    %v1527 = vld [vmem:[%s1466 + $0x1e0] sm:$0xff]
    %v1528 = vld [vmem:[%s1466 + $0x1e8] sm:$0xff]
    %v1529 = vld [vmem:[%s1466 + $0x1f0] sm:$0xff]
    %v1530 = vld [vmem:[%s1466 + $0x1f8] sm:$0xff]
    %v1531 = vunpack.c.l.bf16 %v1467
    %v1532 = vunpack.c.h.bf16 %v1467
    %v1533 = vunpack.c.l.bf16 %v1468
    %v1534 = vunpack.c.h.bf16 %v1468
    %v1535 = vunpack.c.l.bf16 %v1469
    %v1536 = vunpack.c.h.bf16 %v1469
    %v1537 = vunpack.c.l.bf16 %v1470
    %v1538 = vunpack.c.h.bf16 %v1470
    %v1539 = vunpack.c.l.bf16 %v1471
    %v1540 = vunpack.c.h.bf16 %v1471
    %v1541 = vunpack.c.l.bf16 %v1472
    %v1542 = vunpack.c.h.bf16 %v1472
    %v1543 = vunpack.c.l.bf16 %v1473
    %v1544 = vunpack.c.h.bf16 %v1473
    %v1545 = vunpack.c.l.bf16 %v1474
    %v1546 = vunpack.c.h.bf16 %v1474
    %v1547 = vunpack.c.l.bf16 %v1475
    %v1548 = vunpack.c.h.bf16 %v1475
    %v1549 = vunpack.c.l.bf16 %v1476
    %v1550 = vunpack.c.h.bf16 %v1476
    %v1551 = vunpack.c.l.bf16 %v1477
    %v1552 = vunpack.c.h.bf16 %v1477
    %v1553 = vunpack.c.l.bf16 %v1478
    %v1554 = vunpack.c.h.bf16 %v1478
    %v1555 = vunpack.c.l.bf16 %v1479
    %v1556 = vunpack.c.h.bf16 %v1479
    %v1557 = vunpack.c.l.bf16 %v1480
    %v1558 = vunpack.c.h.bf16 %v1480
    %v1559 = vunpack.c.l.bf16 %v1481
    %v1560 = vunpack.c.h.bf16 %v1481
    %v1561 = vunpack.c.l.bf16 %v1482
    %v1562 = vunpack.c.h.bf16 %v1482
    %v1563 = vunpack.c.l.bf16 %v1483
    %v1564 = vunpack.c.h.bf16 %v1483
    %v1565 = vunpack.c.l.bf16 %v1484
    %v1566 = vunpack.c.h.bf16 %v1484
    %v1567 = vunpack.c.l.bf16 %v1485
    %v1568 = vunpack.c.h.bf16 %v1485
    %v1569 = vunpack.c.l.bf16 %v1486
    %v1570 = vunpack.c.h.bf16 %v1486
    %v1571 = vunpack.c.l.bf16 %v1487
    %v1572 = vunpack.c.h.bf16 %v1487
    %v1573 = vunpack.c.l.bf16 %v1488
    %v1574 = vunpack.c.h.bf16 %v1488
    %v1575 = vunpack.c.l.bf16 %v1489
    %v1576 = vunpack.c.h.bf16 %v1489
    %v1577 = vunpack.c.l.bf16 %v1490
    %v1578 = vunpack.c.h.bf16 %v1490
    %v1579 = vunpack.c.l.bf16 %v1491
    %v1580 = vunpack.c.h.bf16 %v1491
    %v1581 = vunpack.c.l.bf16 %v1492
    %v1582 = vunpack.c.h.bf16 %v1492
    %v1583 = vunpack.c.l.bf16 %v1493
    %v1584 = vunpack.c.h.bf16 %v1493
    %v1585 = vunpack.c.l.bf16 %v1494
    %v1586 = vunpack.c.h.bf16 %v1494
    %v1587 = vunpack.c.l.bf16 %v1495
    %v1588 = vunpack.c.h.bf16 %v1495
    %v1589 = vunpack.c.l.bf16 %v1496
    %v1590 = vunpack.c.h.bf16 %v1496
    %v1591 = vunpack.c.l.bf16 %v1497
    %v1592 = vunpack.c.h.bf16 %v1497
    %v1593 = vunpack.c.l.bf16 %v1498
    %v1594 = vunpack.c.h.bf16 %v1498
    %v1595 = vunpack.c.l.bf16 %v1499
    %v1596 = vunpack.c.h.bf16 %v1499
    %v1597 = vunpack.c.l.bf16 %v1500
    %v1598 = vunpack.c.h.bf16 %v1500
    %v1599 = vunpack.c.l.bf16 %v1501
    %v1600 = vunpack.c.h.bf16 %v1501
    %v1601 = vunpack.c.l.bf16 %v1502
    %v1602 = vunpack.c.h.bf16 %v1502
    %v1603 = vunpack.c.l.bf16 %v1503
    %v1604 = vunpack.c.h.bf16 %v1503
    %v1605 = vunpack.c.l.bf16 %v1504
    %v1606 = vunpack.c.h.bf16 %v1504
    %v1607 = vunpack.c.l.bf16 %v1505
    %v1608 = vunpack.c.h.bf16 %v1505
    %v1609 = vunpack.c.l.bf16 %v1506
    %v1610 = vunpack.c.h.bf16 %v1506
    %v1611 = vunpack.c.l.bf16 %v1507
    %v1612 = vunpack.c.h.bf16 %v1507
    %v1613 = vunpack.c.l.bf16 %v1508
    %v1614 = vunpack.c.h.bf16 %v1508
    %v1615 = vunpack.c.l.bf16 %v1509
    %v1616 = vunpack.c.h.bf16 %v1509
    %v1617 = vunpack.c.l.bf16 %v1510
    %v1618 = vunpack.c.h.bf16 %v1510
    %v1619 = vunpack.c.l.bf16 %v1511
    %v1620 = vunpack.c.h.bf16 %v1511
    %v1621 = vunpack.c.l.bf16 %v1512
    %v1622 = vunpack.c.h.bf16 %v1512
    %v1623 = vunpack.c.l.bf16 %v1513
    %v1624 = vunpack.c.h.bf16 %v1513
    %v1625 = vunpack.c.l.bf16 %v1514
    %v1626 = vunpack.c.h.bf16 %v1514
    %v1627 = vunpack.c.l.bf16 %v1515
    %v1628 = vunpack.c.h.bf16 %v1515
    %v1629 = vunpack.c.l.bf16 %v1516
    %v1630 = vunpack.c.h.bf16 %v1516
    %v1631 = vunpack.c.l.bf16 %v1517
    %v1632 = vunpack.c.h.bf16 %v1517
    %v1633 = vunpack.c.l.bf16 %v1518
    %v1634 = vunpack.c.h.bf16 %v1518
    %v1635 = vunpack.c.l.bf16 %v1519
    %v1636 = vunpack.c.h.bf16 %v1519
    %v1637 = vunpack.c.l.bf16 %v1520
    %v1638 = vunpack.c.h.bf16 %v1520
    %v1639 = vunpack.c.l.bf16 %v1521
    %v1640 = vunpack.c.h.bf16 %v1521
    %v1641 = vunpack.c.l.bf16 %v1522
    %v1642 = vunpack.c.h.bf16 %v1522
    %v1643 = vunpack.c.l.bf16 %v1523
    %v1644 = vunpack.c.h.bf16 %v1523
    %v1645 = vunpack.c.l.bf16 %v1524
    %v1646 = vunpack.c.h.bf16 %v1524
    %v1647 = vunpack.c.l.bf16 %v1525
    %v1648 = vunpack.c.h.bf16 %v1525
    %v1649 = vunpack.c.l.bf16 %v1526
    %v1650 = vunpack.c.h.bf16 %v1526
    %v1651 = vunpack.c.l.bf16 %v1527
    %v1652 = vunpack.c.h.bf16 %v1527
    %v1653 = vunpack.c.l.bf16 %v1528
    %v1654 = vunpack.c.h.bf16 %v1528
    %v1655 = vunpack.c.l.bf16 %v1529
    %v1656 = vunpack.c.h.bf16 %v1529
    %v1657 = vunpack.c.l.bf16 %v1530
    %v1658 = vunpack.c.h.bf16 %v1530
    %1659 = vmatprep.subr.mxu0 %v1592
    %1660 = vmatpush1.msra.mxu0 %v1591
    %1661 = vmatprep.subr.mxu0 %v1588
    %1662 = vmatpush1.msra.mxu0 %v1587
    %1663 = vmatprep.subr.mxu0 %v1584
    %1664 = vmatpush1.msra.mxu0 %v1583
    %1665 = vmatprep.subr.mxu0 %v1580
    %1666 = vmatpush1.msra.mxu0 %v1579
    %1667 = vmatprep.subr.mxu0 %v1576
    %1668 = vmatpush1.msra.mxu0 %v1575
    %1669 = vmatprep.subr.mxu0 %v1572
    %1670 = vmatpush1.msra.mxu0 %v1571
    %1671 = vmatprep.subr.mxu0 %v1568
    %1672 = vmatpush1.msra.mxu0 %v1567
    %1673 = vmatprep.subr.mxu0 %v1564
    %1674 = vmatpush1.msra.mxu0 %v1563
    %1675 = vmatprep.subr.mxu0 %v1560
    %1676 = vmatpush1.msra.mxu0 %v1559
    %1677 = vmatprep.subr.mxu0 %v1556
    %1678 = vmatpush1.msra.mxu0 %v1555
    %1679 = vmatprep.subr.mxu0 %v1552
    %1680 = vmatpush1.msra.mxu0 %v1551
    %1681 = vmatprep.subr.mxu0 %v1548
    %1682 = vmatpush1.msra.mxu0 %v1547
    %1683 = vmatprep.subr.mxu0 %v1544
    %1684 = vmatpush1.msra.mxu0 %v1543
    %1685 = vmatprep.subr.mxu0 %v1540
    %1686 = vmatpush1.msra.mxu0 %v1539
    %1687 = vmatprep.subr.mxu0 %v1536
    %1688 = vmatpush1.msra.mxu0 %v1535
    %1689 = vmatprep.subr.mxu0 %v1532
    %1690 = vmatpush1.msra.mxu0 %v1531
    %1691 = vmatprep.subr.mxu0 %v1656
    %1692 = vmatpush2.msra.mxu0 %v1655
    %1693 = vmatprep.subr.mxu0 %v1652
    %1694 = vmatpush2.msra.mxu0 %v1651
    %1695 = vmatprep.subr.mxu0 %v1648
    %1696 = vmatpush2.msra.mxu0 %v1647
    %1697 = vmatprep.subr.mxu0 %v1644
    %1698 = vmatpush2.msra.mxu0 %v1643
    %1699 = vmatprep.subr.mxu0 %v1640
    %1700 = vmatpush2.msra.mxu0 %v1639
    %1701 = vmatprep.subr.mxu0 %v1636
    %1702 = vmatpush2.msra.mxu0 %v1635
    %1703 = vmatprep.subr.mxu0 %v1632
    %1704 = vmatpush2.msra.mxu0 %v1631
    %1705 = vmatprep.subr.mxu0 %v1628
    %1706 = vmatpush2.msra.mxu0 %v1627
    %1707 = vmatprep.subr.mxu0 %v1624
    %1708 = vmatpush2.msra.mxu0 %v1623
    %1709 = vmatprep.subr.mxu0 %v1620
    %1710 = vmatpush2.msra.mxu0 %v1619
    %1711 = vmatprep.subr.mxu0 %v1616
    %1712 = vmatpush2.msra.mxu0 %v1615
    %1713 = vmatprep.subr.mxu0 %v1612
    %1714 = vmatpush2.msra.mxu0 %v1611
    %1715 = vmatprep.subr.mxu0 %v1608
    %1716 = vmatpush2.msra.mxu0 %v1607
    %1717 = vmatprep.subr.mxu0 %v1604
    %1718 = vmatpush2.msra.mxu0 %v1603
    %1719 = vmatprep.subr.mxu0 %v1600
    %1720 = vmatpush2.msra.mxu0 %v1599
    %1721 = vmatprep.subr.mxu0 %v1596
    %1722 = vmatpush2.msra.mxu0 %v1595
    %1723 = vmatprep.mubr.f32.mxu0 %v1465
    %1724 = vmatmul.mubr.f32.gmra.mxu0 %v1464
    %v1725 = vpop.f32.mrf.mxu0
    %v1726 = vadd.f32 0.0, %v1725
    %v1727 = vpop.f32.mrf.mxu0
    %v1728 = vadd.f32 0.0, %v1727
    %1729 = vdwg.mxu0
    %1730 = vmatprep.subr.mxu0 %v1594
    %1731 = vmatpush1.msra.mxu0 %v1593
    %1732 = vmatprep.subr.mxu0 %v1590
    %1733 = vmatpush1.msra.mxu0 %v1589
    %1734 = vmatprep.subr.mxu0 %v1586
    %1735 = vmatpush1.msra.mxu0 %v1585
    %1736 = vmatprep.subr.mxu0 %v1582
    %1737 = vmatpush1.msra.mxu0 %v1581
    %1738 = vmatprep.subr.mxu0 %v1578
    %1739 = vmatpush1.msra.mxu0 %v1577
    %1740 = vmatprep.subr.mxu0 %v1574
    %1741 = vmatpush1.msra.mxu0 %v1573
    %1742 = vmatprep.subr.mxu0 %v1570
    %1743 = vmatpush1.msra.mxu0 %v1569
    %1744 = vmatprep.subr.mxu0 %v1566
    %1745 = vmatpush1.msra.mxu0 %v1565
    %1746 = vmatprep.subr.mxu0 %v1562
    %1747 = vmatpush1.msra.mxu0 %v1561
    %1748 = vmatprep.subr.mxu0 %v1558
    %1749 = vmatpush1.msra.mxu0 %v1557
    %1750 = vmatprep.subr.mxu0 %v1554
    %1751 = vmatpush1.msra.mxu0 %v1553
    %1752 = vmatprep.subr.mxu0 %v1550
    %1753 = vmatpush1.msra.mxu0 %v1549
    %1754 = vmatprep.subr.mxu0 %v1546
    %1755 = vmatpush1.msra.mxu0 %v1545
    %1756 = vmatprep.subr.mxu0 %v1542
    %1757 = vmatpush1.msra.mxu0 %v1541
    %1758 = vmatprep.subr.mxu0 %v1538
    %1759 = vmatpush1.msra.mxu0 %v1537
    %1760 = vmatprep.subr.mxu0 %v1534
    %1761 = vmatpush1.msra.mxu0 %v1533
    %1762 = vmatprep.subr.mxu0 %v1658
    %1763 = vmatpush2.msra.mxu0 %v1657
    %1764 = vmatprep.subr.mxu0 %v1654
    %1765 = vmatpush2.msra.mxu0 %v1653
    %1766 = vmatprep.subr.mxu0 %v1650
    %1767 = vmatpush2.msra.mxu0 %v1649
    %1768 = vmatprep.subr.mxu0 %v1646
    %1769 = vmatpush2.msra.mxu0 %v1645
    %1770 = vmatprep.subr.mxu0 %v1642
    %1771 = vmatpush2.msra.mxu0 %v1641
    %1772 = vmatprep.subr.mxu0 %v1638
    %1773 = vmatpush2.msra.mxu0 %v1637
    %1774 = vmatprep.subr.mxu0 %v1634
    %1775 = vmatpush2.msra.mxu0 %v1633
    %1776 = vmatprep.subr.mxu0 %v1630
    %1777 = vmatpush2.msra.mxu0 %v1629
    %1778 = vmatprep.subr.mxu0 %v1626
    %1779 = vmatpush2.msra.mxu0 %v1625
    %1780 = vmatprep.subr.mxu0 %v1622
    %1781 = vmatpush2.msra.mxu0 %v1621
    %1782 = vmatprep.subr.mxu0 %v1618
    %1783 = vmatpush2.msra.mxu0 %v1617
    %1784 = vmatprep.subr.mxu0 %v1614
    %1785 = vmatpush2.msra.mxu0 %v1613
    %1786 = vmatprep.subr.mxu0 %v1610
    %1787 = vmatpush2.msra.mxu0 %v1609
    %1788 = vmatprep.subr.mxu0 %v1606
    %1789 = vmatpush2.msra.mxu0 %v1605
    %1790 = vmatprep.subr.mxu0 %v1602
    %1791 = vmatpush2.msra.mxu0 %v1601
    %1792 = vmatprep.subr.mxu0 %v1598
    %1793 = vmatpush2.msra.mxu0 %v1597
    %1794 = vmatprep.mubr.f32.mxu0 %v1465
    %1795 = vmatmul.mubr.f32.gmra.mxu0 %v1464
    %v1796 = vpop.f32.mrf.mxu0
    %v1797 = vadd.f32 0.0, %v1796
    %v1798 = vpop.f32.mrf.mxu0
    %v1799 = vadd.f32 0.0, %v1798
    %1800 = vdwg.mxu0
    %v1803 = vrot.slane %v1797, 2
    %v1804 = vrot.slane %v1799, 2
    %v1807 = vsub.f32 %v1726, %v1803
    %v1808 = vsub.f32 %v1728, %v1804
    %v1811 = vrot.slane %v1726, 2
    %v1812 = vrot.slane %v1728, 2
    %v1815 = vadd.f32 %v1797, %v1811
    %v1816 = vadd.f32 %v1799, %v1812
    %v1819 = vrot.slane %v1815, 6
    %v1820 = vrot.slane %v1816, 6
    %v1823 = vsel %vm386, %v1807, %v1819
    %v1824 = vsel %vm386, %v1808, %v1820
    %s1825 = scalar_lea.vmem [#allocation2], 2560
    %v1826 = vld [vmem:[%s1825] sm:$0xff]
    %v1827 = vld [vmem:[%s1825 + $0x8] sm:$0xff]
    %v1828 = vld [vmem:[%s1825 + $0x10] sm:$0xff]
    %v1829 = vld [vmem:[%s1825 + $0x18] sm:$0xff]
    %v1830 = vld [vmem:[%s1825 + $0x20] sm:$0xff]
    %v1831 = vld [vmem:[%s1825 + $0x28] sm:$0xff]
    %v1832 = vld [vmem:[%s1825 + $0x30] sm:$0xff]
    %v1833 = vld [vmem:[%s1825 + $0x38] sm:$0xff]
    %v1834 = vld [vmem:[%s1825 + $0x40] sm:$0xff]
    %v1835 = vld [vmem:[%s1825 + $0x48] sm:$0xff]
    %v1836 = vld [vmem:[%s1825 + $0x50] sm:$0xff]
    %v1837 = vld [vmem:[%s1825 + $0x58] sm:$0xff]
    %v1838 = vld [vmem:[%s1825 + $0x60] sm:$0xff]
    %v1839 = vld [vmem:[%s1825 + $0x68] sm:$0xff]
    %v1840 = vld [vmem:[%s1825 + $0x70] sm:$0xff]
    %v1841 = vld [vmem:[%s1825 + $0x78] sm:$0xff]
    %v1842 = vld [vmem:[%s1825 + $0x80] sm:$0xff]
    %v1843 = vld [vmem:[%s1825 + $0x88] sm:$0xff]
    %v1844 = vld [vmem:[%s1825 + $0x90] sm:$0xff]
    %v1845 = vld [vmem:[%s1825 + $0x98] sm:$0xff]
    %v1846 = vld [vmem:[%s1825 + $0xa0] sm:$0xff]
    %v1847 = vld [vmem:[%s1825 + $0xa8] sm:$0xff]
    %v1848 = vld [vmem:[%s1825 + $0xb0] sm:$0xff]
    %v1849 = vld [vmem:[%s1825 + $0xb8] sm:$0xff]
    %v1850 = vld [vmem:[%s1825 + $0xc0] sm:$0xff]
    %v1851 = vld [vmem:[%s1825 + $0xc8] sm:$0xff]
    %v1852 = vld [vmem:[%s1825 + $0xd0] sm:$0xff]
    %v1853 = vld [vmem:[%s1825 + $0xd8] sm:$0xff]
    %v1854 = vld [vmem:[%s1825 + $0xe0] sm:$0xff]
    %v1855 = vld [vmem:[%s1825 + $0xe8] sm:$0xff]
    %v1856 = vld [vmem:[%s1825 + $0xf0] sm:$0xff]
    %v1857 = vld [vmem:[%s1825 + $0xf8] sm:$0xff]
    %v1858 = vld [vmem:[%s1825 + $0x100] sm:$0xff]
    %v1859 = vld [vmem:[%s1825 + $0x108] sm:$0xff]
    %v1860 = vld [vmem:[%s1825 + $0x110] sm:$0xff]
    %v1861 = vld [vmem:[%s1825 + $0x118] sm:$0xff]
    %v1862 = vld [vmem:[%s1825 + $0x120] sm:$0xff]
    %v1863 = vld [vmem:[%s1825 + $0x128] sm:$0xff]
    %v1864 = vld [vmem:[%s1825 + $0x130] sm:$0xff]
    %v1865 = vld [vmem:[%s1825 + $0x138] sm:$0xff]
    %v1866 = vld [vmem:[%s1825 + $0x140] sm:$0xff]
    %v1867 = vld [vmem:[%s1825 + $0x148] sm:$0xff]
    %v1868 = vld [vmem:[%s1825 + $0x150] sm:$0xff]
    %v1869 = vld [vmem:[%s1825 + $0x158] sm:$0xff]
    %v1870 = vld [vmem:[%s1825 + $0x160] sm:$0xff]
    %v1871 = vld [vmem:[%s1825 + $0x168] sm:$0xff]
    %v1872 = vld [vmem:[%s1825 + $0x170] sm:$0xff]
    %v1873 = vld [vmem:[%s1825 + $0x178] sm:$0xff]
    %v1874 = vld [vmem:[%s1825 + $0x180] sm:$0xff]
    %v1875 = vld [vmem:[%s1825 + $0x188] sm:$0xff]
    %v1876 = vld [vmem:[%s1825 + $0x190] sm:$0xff]
    %v1877 = vld [vmem:[%s1825 + $0x198] sm:$0xff]
    %v1878 = vld [vmem:[%s1825 + $0x1a0] sm:$0xff]
    %v1879 = vld [vmem:[%s1825 + $0x1a8] sm:$0xff]
    %v1880 = vld [vmem:[%s1825 + $0x1b0] sm:$0xff]
    %v1881 = vld [vmem:[%s1825 + $0x1b8] sm:$0xff]
    %v1882 = vld [vmem:[%s1825 + $0x1c0] sm:$0xff]
    %v1883 = vld [vmem:[%s1825 + $0x1c8] sm:$0xff]
    %v1884 = vld [vmem:[%s1825 + $0x1d0] sm:$0xff]
    %v1885 = vld [vmem:[%s1825 + $0x1d8] sm:$0xff]
    %v1886 = vld [vmem:[%s1825 + $0x1e0] sm:$0xff]
    %v1887 = vld [vmem:[%s1825 + $0x1e8] sm:$0xff]
    %v1888 = vld [vmem:[%s1825 + $0x1f0] sm:$0xff]
    %v1889 = vld [vmem:[%s1825 + $0x1f8] sm:$0xff]
    %v1890 = vunpack.c.l.bf16 %v1826
    %v1891 = vunpack.c.h.bf16 %v1826
    %v1892 = vunpack.c.l.bf16 %v1827
    %v1893 = vunpack.c.h.bf16 %v1827
    %v1894 = vunpack.c.l.bf16 %v1828
    %v1895 = vunpack.c.h.bf16 %v1828
    %v1896 = vunpack.c.l.bf16 %v1829
    %v1897 = vunpack.c.h.bf16 %v1829
    %v1898 = vunpack.c.l.bf16 %v1830
    %v1899 = vunpack.c.h.bf16 %v1830
    %v1900 = vunpack.c.l.bf16 %v1831
    %v1901 = vunpack.c.h.bf16 %v1831
    %v1902 = vunpack.c.l.bf16 %v1832
    %v1903 = vunpack.c.h.bf16 %v1832
    %v1904 = vunpack.c.l.bf16 %v1833
    %v1905 = vunpack.c.h.bf16 %v1833
    %v1906 = vunpack.c.l.bf16 %v1834
    %v1907 = vunpack.c.h.bf16 %v1834
    %v1908 = vunpack.c.l.bf16 %v1835
    %v1909 = vunpack.c.h.bf16 %v1835
    %v1910 = vunpack.c.l.bf16 %v1836
    %v1911 = vunpack.c.h.bf16 %v1836
    %v1912 = vunpack.c.l.bf16 %v1837
    %v1913 = vunpack.c.h.bf16 %v1837
    %v1914 = vunpack.c.l.bf16 %v1838
    %v1915 = vunpack.c.h.bf16 %v1838
    %v1916 = vunpack.c.l.bf16 %v1839
    %v1917 = vunpack.c.h.bf16 %v1839
    %v1918 = vunpack.c.l.bf16 %v1840
    %v1919 = vunpack.c.h.bf16 %v1840
    %v1920 = vunpack.c.l.bf16 %v1841
    %v1921 = vunpack.c.h.bf16 %v1841
    %v1922 = vunpack.c.l.bf16 %v1842
    %v1923 = vunpack.c.h.bf16 %v1842
    %v1924 = vunpack.c.l.bf16 %v1843
    %v1925 = vunpack.c.h.bf16 %v1843
    %v1926 = vunpack.c.l.bf16 %v1844
    %v1927 = vunpack.c.h.bf16 %v1844
    %v1928 = vunpack.c.l.bf16 %v1845
    %v1929 = vunpack.c.h.bf16 %v1845
    %v1930 = vunpack.c.l.bf16 %v1846
    %v1931 = vunpack.c.h.bf16 %v1846
    %v1932 = vunpack.c.l.bf16 %v1847
    %v1933 = vunpack.c.h.bf16 %v1847
    %v1934 = vunpack.c.l.bf16 %v1848
    %v1935 = vunpack.c.h.bf16 %v1848
    %v1936 = vunpack.c.l.bf16 %v1849
    %v1937 = vunpack.c.h.bf16 %v1849
    %v1938 = vunpack.c.l.bf16 %v1850
    %v1939 = vunpack.c.h.bf16 %v1850
    %v1940 = vunpack.c.l.bf16 %v1851
    %v1941 = vunpack.c.h.bf16 %v1851
    %v1942 = vunpack.c.l.bf16 %v1852
    %v1943 = vunpack.c.h.bf16 %v1852
    %v1944 = vunpack.c.l.bf16 %v1853
    %v1945 = vunpack.c.h.bf16 %v1853
    %v1946 = vunpack.c.l.bf16 %v1854
    %v1947 = vunpack.c.h.bf16 %v1854
    %v1948 = vunpack.c.l.bf16 %v1855
    %v1949 = vunpack.c.h.bf16 %v1855
    %v1950 = vunpack.c.l.bf16 %v1856
    %v1951 = vunpack.c.h.bf16 %v1856
    %v1952 = vunpack.c.l.bf16 %v1857
    %v1953 = vunpack.c.h.bf16 %v1857
    %v1954 = vunpack.c.l.bf16 %v1858
    %v1955 = vunpack.c.h.bf16 %v1858
    %v1956 = vunpack.c.l.bf16 %v1859
    %v1957 = vunpack.c.h.bf16 %v1859
    %v1958 = vunpack.c.l.bf16 %v1860
    %v1959 = vunpack.c.h.bf16 %v1860
    %v1960 = vunpack.c.l.bf16 %v1861
    %v1961 = vunpack.c.h.bf16 %v1861
    %v1962 = vunpack.c.l.bf16 %v1862
    %v1963 = vunpack.c.h.bf16 %v1862
    %v1964 = vunpack.c.l.bf16 %v1863
    %v1965 = vunpack.c.h.bf16 %v1863
    %v1966 = vunpack.c.l.bf16 %v1864
    %v1967 = vunpack.c.h.bf16 %v1864
    %v1968 = vunpack.c.l.bf16 %v1865
    %v1969 = vunpack.c.h.bf16 %v1865
    %v1970 = vunpack.c.l.bf16 %v1866
    %v1971 = vunpack.c.h.bf16 %v1866
    %v1972 = vunpack.c.l.bf16 %v1867
    %v1973 = vunpack.c.h.bf16 %v1867
    %v1974 = vunpack.c.l.bf16 %v1868
    %v1975 = vunpack.c.h.bf16 %v1868
    %v1976 = vunpack.c.l.bf16 %v1869
    %v1977 = vunpack.c.h.bf16 %v1869
    %v1978 = vunpack.c.l.bf16 %v1870
    %v1979 = vunpack.c.h.bf16 %v1870
    %v1980 = vunpack.c.l.bf16 %v1871
    %v1981 = vunpack.c.h.bf16 %v1871
    %v1982 = vunpack.c.l.bf16 %v1872
    %v1983 = vunpack.c.h.bf16 %v1872
    %v1984 = vunpack.c.l.bf16 %v1873
    %v1985 = vunpack.c.h.bf16 %v1873
    %v1986 = vunpack.c.l.bf16 %v1874
    %v1987 = vunpack.c.h.bf16 %v1874
    %v1988 = vunpack.c.l.bf16 %v1875
    %v1989 = vunpack.c.h.bf16 %v1875
    %v1990 = vunpack.c.l.bf16 %v1876
    %v1991 = vunpack.c.h.bf16 %v1876
    %v1992 = vunpack.c.l.bf16 %v1877
    %v1993 = vunpack.c.h.bf16 %v1877
    %v1994 = vunpack.c.l.bf16 %v1878
    %v1995 = vunpack.c.h.bf16 %v1878
    %v1996 = vunpack.c.l.bf16 %v1879
    %v1997 = vunpack.c.h.bf16 %v1879
    %v1998 = vunpack.c.l.bf16 %v1880
    %v1999 = vunpack.c.h.bf16 %v1880
    %v2000 = vunpack.c.l.bf16 %v1881
    %v2001 = vunpack.c.h.bf16 %v1881
    %v2002 = vunpack.c.l.bf16 %v1882
    %v2003 = vunpack.c.h.bf16 %v1882
    %v2004 = vunpack.c.l.bf16 %v1883
    %v2005 = vunpack.c.h.bf16 %v1883
    %v2006 = vunpack.c.l.bf16 %v1884
    %v2007 = vunpack.c.h.bf16 %v1884
    %v2008 = vunpack.c.l.bf16 %v1885
    %v2009 = vunpack.c.h.bf16 %v1885
    %v2010 = vunpack.c.l.bf16 %v1886
    %v2011 = vunpack.c.h.bf16 %v1886
    %v2012 = vunpack.c.l.bf16 %v1887
    %v2013 = vunpack.c.h.bf16 %v1887
    %v2014 = vunpack.c.l.bf16 %v1888
    %v2015 = vunpack.c.h.bf16 %v1888
    %v2016 = vunpack.c.l.bf16 %v1889
    %v2017 = vunpack.c.h.bf16 %v1889
    %2018 = vmatprep.subr.mxu0 %v1951
    %2019 = vmatpush1.msra.mxu0 %v1950
    %2020 = vmatprep.subr.mxu0 %v1947
    %2021 = vmatpush1.msra.mxu0 %v1946
    %2022 = vmatprep.subr.mxu0 %v1943
    %2023 = vmatpush1.msra.mxu0 %v1942
    %2024 = vmatprep.subr.mxu0 %v1939
    %2025 = vmatpush1.msra.mxu0 %v1938
    %2026 = vmatprep.subr.mxu0 %v1935
    %2027 = vmatpush1.msra.mxu0 %v1934
    %2028 = vmatprep.subr.mxu0 %v1931
    %2029 = vmatpush1.msra.mxu0 %v1930
    %2030 = vmatprep.subr.mxu0 %v1927
    %2031 = vmatpush1.msra.mxu0 %v1926
    %2032 = vmatprep.subr.mxu0 %v1923
    %2033 = vmatpush1.msra.mxu0 %v1922
    %2034 = vmatprep.subr.mxu0 %v1919
    %2035 = vmatpush1.msra.mxu0 %v1918
    %2036 = vmatprep.subr.mxu0 %v1915
    %2037 = vmatpush1.msra.mxu0 %v1914
    %2038 = vmatprep.subr.mxu0 %v1911
    %2039 = vmatpush1.msra.mxu0 %v1910
    %2040 = vmatprep.subr.mxu0 %v1907
    %2041 = vmatpush1.msra.mxu0 %v1906
    %2042 = vmatprep.subr.mxu0 %v1903
    %2043 = vmatpush1.msra.mxu0 %v1902
    %2044 = vmatprep.subr.mxu0 %v1899
    %2045 = vmatpush1.msra.mxu0 %v1898
    %2046 = vmatprep.subr.mxu0 %v1895
    %2047 = vmatpush1.msra.mxu0 %v1894
    %2048 = vmatprep.subr.mxu0 %v1891
    %2049 = vmatpush1.msra.mxu0 %v1890
    %2050 = vmatprep.subr.mxu0 %v2015
    %2051 = vmatpush2.msra.mxu0 %v2014
    %2052 = vmatprep.subr.mxu0 %v2011
    %2053 = vmatpush2.msra.mxu0 %v2010
    %2054 = vmatprep.subr.mxu0 %v2007
    %2055 = vmatpush2.msra.mxu0 %v2006
    %2056 = vmatprep.subr.mxu0 %v2003
    %2057 = vmatpush2.msra.mxu0 %v2002
    %2058 = vmatprep.subr.mxu0 %v1999
    %2059 = vmatpush2.msra.mxu0 %v1998
    %2060 = vmatprep.subr.mxu0 %v1995
    %2061 = vmatpush2.msra.mxu0 %v1994
    %2062 = vmatprep.subr.mxu0 %v1991
    %2063 = vmatpush2.msra.mxu0 %v1990
    %2064 = vmatprep.subr.mxu0 %v1987
    %2065 = vmatpush2.msra.mxu0 %v1986
    %2066 = vmatprep.subr.mxu0 %v1983
    %2067 = vmatpush2.msra.mxu0 %v1982
    %2068 = vmatprep.subr.mxu0 %v1979
    %2069 = vmatpush2.msra.mxu0 %v1978
    %2070 = vmatprep.subr.mxu0 %v1975
    %2071 = vmatpush2.msra.mxu0 %v1974
    %2072 = vmatprep.subr.mxu0 %v1971
    %2073 = vmatpush2.msra.mxu0 %v1970
    %2074 = vmatprep.subr.mxu0 %v1967
    %2075 = vmatpush2.msra.mxu0 %v1966
    %2076 = vmatprep.subr.mxu0 %v1963
    %2077 = vmatpush2.msra.mxu0 %v1962
    %2078 = vmatprep.subr.mxu0 %v1959
    %2079 = vmatpush2.msra.mxu0 %v1958
    %2080 = vmatprep.subr.mxu0 %v1955
    %2081 = vmatpush2.msra.mxu0 %v1954
    %2082 = vmatprep.mubr.f32.mxu0 %v1824
    %2083 = vmatmul.mubr.f32.gmra.mxu0 %v1823
    %v2084 = vpop.f32.mrf.mxu0
    %v2085 = vadd.f32 0.0, %v2084
    %v2086 = vpop.f32.mrf.mxu0
    %v2087 = vadd.f32 0.0, %v2086
    %2088 = vdwg.mxu0
    %2089 = vmatprep.subr.mxu0 %v1953
    %2090 = vmatpush1.msra.mxu0 %v1952
    %2091 = vmatprep.subr.mxu0 %v1949
    %2092 = vmatpush1.msra.mxu0 %v1948
    %2093 = vmatprep.subr.mxu0 %v1945
    %2094 = vmatpush1.msra.mxu0 %v1944
    %2095 = vmatprep.subr.mxu0 %v1941
    %2096 = vmatpush1.msra.mxu0 %v1940
    %2097 = vmatprep.subr.mxu0 %v1937
    %2098 = vmatpush1.msra.mxu0 %v1936
    %2099 = vmatprep.subr.mxu0 %v1933
    %2100 = vmatpush1.msra.mxu0 %v1932
    %2101 = vmatprep.subr.mxu0 %v1929
    %2102 = vmatpush1.msra.mxu0 %v1928
    %2103 = vmatprep.subr.mxu0 %v1925
    %2104 = vmatpush1.msra.mxu0 %v1924
    %2105 = vmatprep.subr.mxu0 %v1921
    %2106 = vmatpush1.msra.mxu0 %v1920
    %2107 = vmatprep.subr.mxu0 %v1917
    %2108 = vmatpush1.msra.mxu0 %v1916
    %2109 = vmatprep.subr.mxu0 %v1913
    %2110 = vmatpush1.msra.mxu0 %v1912
    %2111 = vmatprep.subr.mxu0 %v1909
    %2112 = vmatpush1.msra.mxu0 %v1908
    %2113 = vmatprep.subr.mxu0 %v1905
    %2114 = vmatpush1.msra.mxu0 %v1904
    %2115 = vmatprep.subr.mxu0 %v1901
    %2116 = vmatpush1.msra.mxu0 %v1900
    %2117 = vmatprep.subr.mxu0 %v1897
    %2118 = vmatpush1.msra.mxu0 %v1896
    %2119 = vmatprep.subr.mxu0 %v1893
    %2120 = vmatpush1.msra.mxu0 %v1892
    %2121 = vmatprep.subr.mxu0 %v2017
    %2122 = vmatpush2.msra.mxu0 %v2016
    %2123 = vmatprep.subr.mxu0 %v2013
    %2124 = vmatpush2.msra.mxu0 %v2012
    %2125 = vmatprep.subr.mxu0 %v2009
    %2126 = vmatpush2.msra.mxu0 %v2008
    %2127 = vmatprep.subr.mxu0 %v2005
    %2128 = vmatpush2.msra.mxu0 %v2004
    %2129 = vmatprep.subr.mxu0 %v2001
    %2130 = vmatpush2.msra.mxu0 %v2000
    %2131 = vmatprep.subr.mxu0 %v1997
    %2132 = vmatpush2.msra.mxu0 %v1996
    %2133 = vmatprep.subr.mxu0 %v1993
    %2134 = vmatpush2.msra.mxu0 %v1992
    %2135 = vmatprep.subr.mxu0 %v1989
    %2136 = vmatpush2.msra.mxu0 %v1988
    %2137 = vmatprep.subr.mxu0 %v1985
    %2138 = vmatpush2.msra.mxu0 %v1984
    %2139 = vmatprep.subr.mxu0 %v1981
    %2140 = vmatpush2.msra.mxu0 %v1980
    %2141 = vmatprep.subr.mxu0 %v1977
    %2142 = vmatpush2.msra.mxu0 %v1976
    %2143 = vmatprep.subr.mxu0 %v1973
    %2144 = vmatpush2.msra.mxu0 %v1972
    %2145 = vmatprep.subr.mxu0 %v1969
    %2146 = vmatpush2.msra.mxu0 %v1968
    %2147 = vmatprep.subr.mxu0 %v1965
    %2148 = vmatpush2.msra.mxu0 %v1964
    %2149 = vmatprep.subr.mxu0 %v1961
    %2150 = vmatpush2.msra.mxu0 %v1960
    %2151 = vmatprep.subr.mxu0 %v1957
    %2152 = vmatpush2.msra.mxu0 %v1956
    %2153 = vmatprep.mubr.f32.mxu0 %v1824
    %2154 = vmatmul.mubr.f32.gmra.mxu0 %v1823
    %v2155 = vpop.f32.mrf.mxu0
    %v2156 = vadd.f32 0.0, %v2155
    %v2157 = vpop.f32.mrf.mxu0
    %v2158 = vadd.f32 0.0, %v2157
    %2159 = vdwg.mxu0
    %v2162 = vrot.slane %v2156, 2
    %v2163 = vrot.slane %v2158, 2
    %v2166 = vsub.f32 %v2085, %v2162
    %v2167 = vsub.f32 %v2087, %v2163
    %v2170 = vrot.slane %v2085, 2
    %v2171 = vrot.slane %v2087, 2
    %v2174 = vadd.f32 %v2156, %v2170
    %v2175 = vadd.f32 %v2158, %v2171
    %v2178 = vrot.slane %v2174, 6
    %v2179 = vrot.slane %v2175, 6
    %v2182 = vsel %vm386, %v2166, %v2178
    %v2183 = vsel %vm386, %v2167, %v2179
    %s2184 = scalar_lea.vmem [#allocation2], 3072
    %v2185 = vld [vmem:[%s2184] sm:$0xff]
    %v2186 = vld [vmem:[%s2184 + $0x8] sm:$0xff]
    %v2187 = vld [vmem:[%s2184 + $0x10] sm:$0xff]
    %v2188 = vld [vmem:[%s2184 + $0x18] sm:$0xff]
    %v2189 = vld [vmem:[%s2184 + $0x20] sm:$0xff]
    %v2190 = vld [vmem:[%s2184 + $0x28] sm:$0xff]
    %v2191 = vld [vmem:[%s2184 + $0x30] sm:$0xff]
    %v2192 = vld [vmem:[%s2184 + $0x38] sm:$0xff]
    %v2193 = vld [vmem:[%s2184 + $0x40] sm:$0xff]
    %v2194 = vld [vmem:[%s2184 + $0x48] sm:$0xff]
    %v2195 = vld [vmem:[%s2184 + $0x50] sm:$0xff]
    %v2196 = vld [vmem:[%s2184 + $0x58] sm:$0xff]
    %v2197 = vld [vmem:[%s2184 + $0x60] sm:$0xff]
    %v2198 = vld [vmem:[%s2184 + $0x68] sm:$0xff]
    %v2199 = vld [vmem:[%s2184 + $0x70] sm:$0xff]
    %v2200 = vld [vmem:[%s2184 + $0x78] sm:$0xff]
    %v2201 = vld [vmem:[%s2184 + $0x80] sm:$0xff]
    %v2202 = vld [vmem:[%s2184 + $0x88] sm:$0xff]
    %v2203 = vld [vmem:[%s2184 + $0x90] sm:$0xff]
    %v2204 = vld [vmem:[%s2184 + $0x98] sm:$0xff]
    %v2205 = vld [vmem:[%s2184 + $0xa0] sm:$0xff]
    %v2206 = vld [vmem:[%s2184 + $0xa8] sm:$0xff]
    %v2207 = vld [vmem:[%s2184 + $0xb0] sm:$0xff]
    %v2208 = vld [vmem:[%s2184 + $0xb8] sm:$0xff]
    %v2209 = vld [vmem:[%s2184 + $0xc0] sm:$0xff]
    %v2210 = vld [vmem:[%s2184 + $0xc8] sm:$0xff]
    %v2211 = vld [vmem:[%s2184 + $0xd0] sm:$0xff]
    %v2212 = vld [vmem:[%s2184 + $0xd8] sm:$0xff]
    %v2213 = vld [vmem:[%s2184 + $0xe0] sm:$0xff]
    %v2214 = vld [vmem:[%s2184 + $0xe8] sm:$0xff]
    %v2215 = vld [vmem:[%s2184 + $0xf0] sm:$0xff]
    %v2216 = vld [vmem:[%s2184 + $0xf8] sm:$0xff]
    %v2217 = vld [vmem:[%s2184 + $0x100] sm:$0xff]
    %v2218 = vld [vmem:[%s2184 + $0x108] sm:$0xff]
    %v2219 = vld [vmem:[%s2184 + $0x110] sm:$0xff]
    %v2220 = vld [vmem:[%s2184 + $0x118] sm:$0xff]
    %v2221 = vld [vmem:[%s2184 + $0x120] sm:$0xff]
    %v2222 = vld [vmem:[%s2184 + $0x128] sm:$0xff]
    %v2223 = vld [vmem:[%s2184 + $0x130] sm:$0xff]
    %v2224 = vld [vmem:[%s2184 + $0x138] sm:$0xff]
    %v2225 = vld [vmem:[%s2184 + $0x140] sm:$0xff]
    %v2226 = vld [vmem:[%s2184 + $0x148] sm:$0xff]
    %v2227 = vld [vmem:[%s2184 + $0x150] sm:$0xff]
    %v2228 = vld [vmem:[%s2184 + $0x158] sm:$0xff]
    %v2229 = vld [vmem:[%s2184 + $0x160] sm:$0xff]
    %v2230 = vld [vmem:[%s2184 + $0x168] sm:$0xff]
    %v2231 = vld [vmem:[%s2184 + $0x170] sm:$0xff]
    %v2232 = vld [vmem:[%s2184 + $0x178] sm:$0xff]
    %v2233 = vld [vmem:[%s2184 + $0x180] sm:$0xff]
    %v2234 = vld [vmem:[%s2184 + $0x188] sm:$0xff]
    %v2235 = vld [vmem:[%s2184 + $0x190] sm:$0xff]
    %v2236 = vld [vmem:[%s2184 + $0x198] sm:$0xff]
    %v2237 = vld [vmem:[%s2184 + $0x1a0] sm:$0xff]
    %v2238 = vld [vmem:[%s2184 + $0x1a8] sm:$0xff]
    %v2239 = vld [vmem:[%s2184 + $0x1b0] sm:$0xff]
    %v2240 = vld [vmem:[%s2184 + $0x1b8] sm:$0xff]
    %v2241 = vld [vmem:[%s2184 + $0x1c0] sm:$0xff]
    %v2242 = vld [vmem:[%s2184 + $0x1c8] sm:$0xff]
    %v2243 = vld [vmem:[%s2184 + $0x1d0] sm:$0xff]
    %v2244 = vld [vmem:[%s2184 + $0x1d8] sm:$0xff]
    %v2245 = vld [vmem:[%s2184 + $0x1e0] sm:$0xff]
    %v2246 = vld [vmem:[%s2184 + $0x1e8] sm:$0xff]
    %v2247 = vld [vmem:[%s2184 + $0x1f0] sm:$0xff]
    %v2248 = vld [vmem:[%s2184 + $0x1f8] sm:$0xff]
    %v2249 = vunpack.c.l.bf16 %v2185
    %v2250 = vunpack.c.h.bf16 %v2185
    %v2251 = vunpack.c.l.bf16 %v2186
    %v2252 = vunpack.c.h.bf16 %v2186
    %v2253 = vunpack.c.l.bf16 %v2187
    %v2254 = vunpack.c.h.bf16 %v2187
    %v2255 = vunpack.c.l.bf16 %v2188
    %v2256 = vunpack.c.h.bf16 %v2188
    %v2257 = vunpack.c.l.bf16 %v2189
    %v2258 = vunpack.c.h.bf16 %v2189
    %v2259 = vunpack.c.l.bf16 %v2190
    %v2260 = vunpack.c.h.bf16 %v2190
    %v2261 = vunpack.c.l.bf16 %v2191
    %v2262 = vunpack.c.h.bf16 %v2191
    %v2263 = vunpack.c.l.bf16 %v2192
    %v2264 = vunpack.c.h.bf16 %v2192
    %v2265 = vunpack.c.l.bf16 %v2193
    %v2266 = vunpack.c.h.bf16 %v2193
    %v2267 = vunpack.c.l.bf16 %v2194
    %v2268 = vunpack.c.h.bf16 %v2194
    %v2269 = vunpack.c.l.bf16 %v2195
    %v2270 = vunpack.c.h.bf16 %v2195
    %v2271 = vunpack.c.l.bf16 %v2196
    %v2272 = vunpack.c.h.bf16 %v2196
    %v2273 = vunpack.c.l.bf16 %v2197
    %v2274 = vunpack.c.h.bf16 %v2197
    %v2275 = vunpack.c.l.bf16 %v2198
    %v2276 = vunpack.c.h.bf16 %v2198
    %v2277 = vunpack.c.l.bf16 %v2199
    %v2278 = vunpack.c.h.bf16 %v2199
    %v2279 = vunpack.c.l.bf16 %v2200
    %v2280 = vunpack.c.h.bf16 %v2200
    %v2281 = vunpack.c.l.bf16 %v2201
    %v2282 = vunpack.c.h.bf16 %v2201
    %v2283 = vunpack.c.l.bf16 %v2202
    %v2284 = vunpack.c.h.bf16 %v2202
    %v2285 = vunpack.c.l.bf16 %v2203
    %v2286 = vunpack.c.h.bf16 %v2203
    %v2287 = vunpack.c.l.bf16 %v2204
    %v2288 = vunpack.c.h.bf16 %v2204
    %v2289 = vunpack.c.l.bf16 %v2205
    %v2290 = vunpack.c.h.bf16 %v2205
    %v2291 = vunpack.c.l.bf16 %v2206
    %v2292 = vunpack.c.h.bf16 %v2206
    %v2293 = vunpack.c.l.bf16 %v2207
    %v2294 = vunpack.c.h.bf16 %v2207
    %v2295 = vunpack.c.l.bf16 %v2208
    %v2296 = vunpack.c.h.bf16 %v2208
    %v2297 = vunpack.c.l.bf16 %v2209
    %v2298 = vunpack.c.h.bf16 %v2209
    %v2299 = vunpack.c.l.bf16 %v2210
    %v2300 = vunpack.c.h.bf16 %v2210
    %v2301 = vunpack.c.l.bf16 %v2211
    %v2302 = vunpack.c.h.bf16 %v2211
    %v2303 = vunpack.c.l.bf16 %v2212
    %v2304 = vunpack.c.h.bf16 %v2212
    %v2305 = vunpack.c.l.bf16 %v2213
    %v2306 = vunpack.c.h.bf16 %v2213
    %v2307 = vunpack.c.l.bf16 %v2214
    %v2308 = vunpack.c.h.bf16 %v2214
    %v2309 = vunpack.c.l.bf16 %v2215
    %v2310 = vunpack.c.h.bf16 %v2215
    %v2311 = vunpack.c.l.bf16 %v2216
    %v2312 = vunpack.c.h.bf16 %v2216
    %v2313 = vunpack.c.l.bf16 %v2217
    %v2314 = vunpack.c.h.bf16 %v2217
    %v2315 = vunpack.c.l.bf16 %v2218
    %v2316 = vunpack.c.h.bf16 %v2218
    %v2317 = vunpack.c.l.bf16 %v2219
    %v2318 = vunpack.c.h.bf16 %v2219
    %v2319 = vunpack.c.l.bf16 %v2220
    %v2320 = vunpack.c.h.bf16 %v2220
    %v2321 = vunpack.c.l.bf16 %v2221
    %v2322 = vunpack.c.h.bf16 %v2221
    %v2323 = vunpack.c.l.bf16 %v2222
    %v2324 = vunpack.c.h.bf16 %v2222
    %v2325 = vunpack.c.l.bf16 %v2223
    %v2326 = vunpack.c.h.bf16 %v2223
    %v2327 = vunpack.c.l.bf16 %v2224
    %v2328 = vunpack.c.h.bf16 %v2224
    %v2329 = vunpack.c.l.bf16 %v2225
    %v2330 = vunpack.c.h.bf16 %v2225
    %v2331 = vunpack.c.l.bf16 %v2226
    %v2332 = vunpack.c.h.bf16 %v2226
    %v2333 = vunpack.c.l.bf16 %v2227
    %v2334 = vunpack.c.h.bf16 %v2227
    %v2335 = vunpack.c.l.bf16 %v2228
    %v2336 = vunpack.c.h.bf16 %v2228
    %v2337 = vunpack.c.l.bf16 %v2229
    %v2338 = vunpack.c.h.bf16 %v2229
    %v2339 = vunpack.c.l.bf16 %v2230
    %v2340 = vunpack.c.h.bf16 %v2230
    %v2341 = vunpack.c.l.bf16 %v2231
    %v2342 = vunpack.c.h.bf16 %v2231
    %v2343 = vunpack.c.l.bf16 %v2232
    %v2344 = vunpack.c.h.bf16 %v2232
    %v2345 = vunpack.c.l.bf16 %v2233
    %v2346 = vunpack.c.h.bf16 %v2233
    %v2347 = vunpack.c.l.bf16 %v2234
    %v2348 = vunpack.c.h.bf16 %v2234
    %v2349 = vunpack.c.l.bf16 %v2235
    %v2350 = vunpack.c.h.bf16 %v2235
    %v2351 = vunpack.c.l.bf16 %v2236
    %v2352 = vunpack.c.h.bf16 %v2236
    %v2353 = vunpack.c.l.bf16 %v2237
    %v2354 = vunpack.c.h.bf16 %v2237
    %v2355 = vunpack.c.l.bf16 %v2238
    %v2356 = vunpack.c.h.bf16 %v2238
    %v2357 = vunpack.c.l.bf16 %v2239
    %v2358 = vunpack.c.h.bf16 %v2239
    %v2359 = vunpack.c.l.bf16 %v2240
    %v2360 = vunpack.c.h.bf16 %v2240
    %v2361 = vunpack.c.l.bf16 %v2241
    %v2362 = vunpack.c.h.bf16 %v2241
    %v2363 = vunpack.c.l.bf16 %v2242
    %v2364 = vunpack.c.h.bf16 %v2242
    %v2365 = vunpack.c.l.bf16 %v2243
    %v2366 = vunpack.c.h.bf16 %v2243
    %v2367 = vunpack.c.l.bf16 %v2244
    %v2368 = vunpack.c.h.bf16 %v2244
    %v2369 = vunpack.c.l.bf16 %v2245
    %v2370 = vunpack.c.h.bf16 %v2245
    %v2371 = vunpack.c.l.bf16 %v2246
    %v2372 = vunpack.c.h.bf16 %v2246
    %v2373 = vunpack.c.l.bf16 %v2247
    %v2374 = vunpack.c.h.bf16 %v2247
    %v2375 = vunpack.c.l.bf16 %v2248
    %v2376 = vunpack.c.h.bf16 %v2248
    %2377 = vmatprep.subr.mxu0 %v2310
    %2378 = vmatpush1.msra.mxu0 %v2309
    %2379 = vmatprep.subr.mxu0 %v2306
    %2380 = vmatpush1.msra.mxu0 %v2305
    %2381 = vmatprep.subr.mxu0 %v2302
    %2382 = vmatpush1.msra.mxu0 %v2301
    %2383 = vmatprep.subr.mxu0 %v2298
    %2384 = vmatpush1.msra.mxu0 %v2297
    %2385 = vmatprep.subr.mxu0 %v2294
    %2386 = vmatpush1.msra.mxu0 %v2293
    %2387 = vmatprep.subr.mxu0 %v2290
    %2388 = vmatpush1.msra.mxu0 %v2289
    %2389 = vmatprep.subr.mxu0 %v2286
    %2390 = vmatpush1.msra.mxu0 %v2285
    %2391 = vmatprep.subr.mxu0 %v2282
    %2392 = vmatpush1.msra.mxu0 %v2281
    %2393 = vmatprep.subr.mxu0 %v2278
    %2394 = vmatpush1.msra.mxu0 %v2277
    %2395 = vmatprep.subr.mxu0 %v2274
    %2396 = vmatpush1.msra.mxu0 %v2273
    %2397 = vmatprep.subr.mxu0 %v2270
    %2398 = vmatpush1.msra.mxu0 %v2269
    %2399 = vmatprep.subr.mxu0 %v2266
    %2400 = vmatpush1.msra.mxu0 %v2265
    %2401 = vmatprep.subr.mxu0 %v2262
    %2402 = vmatpush1.msra.mxu0 %v2261
    %2403 = vmatprep.subr.mxu0 %v2258
    %2404 = vmatpush1.msra.mxu0 %v2257
    %2405 = vmatprep.subr.mxu0 %v2254
    %2406 = vmatpush1.msra.mxu0 %v2253
    %2407 = vmatprep.subr.mxu0 %v2250
    %2408 = vmatpush1.msra.mxu0 %v2249
    %2409 = vmatprep.subr.mxu0 %v2374
    %2410 = vmatpush2.msra.mxu0 %v2373
    %2411 = vmatprep.subr.mxu0 %v2370
    %2412 = vmatpush2.msra.mxu0 %v2369
    %2413 = vmatprep.subr.mxu0 %v2366
    %2414 = vmatpush2.msra.mxu0 %v2365
    %2415 = vmatprep.subr.mxu0 %v2362
    %2416 = vmatpush2.msra.mxu0 %v2361
    %2417 = vmatprep.subr.mxu0 %v2358
    %2418 = vmatpush2.msra.mxu0 %v2357
    %2419 = vmatprep.subr.mxu0 %v2354
    %2420 = vmatpush2.msra.mxu0 %v2353
    %2421 = vmatprep.subr.mxu0 %v2350
    %2422 = vmatpush2.msra.mxu0 %v2349
    %2423 = vmatprep.subr.mxu0 %v2346
    %2424 = vmatpush2.msra.mxu0 %v2345
    %2425 = vmatprep.subr.mxu0 %v2342
    %2426 = vmatpush2.msra.mxu0 %v2341
    %2427 = vmatprep.subr.mxu0 %v2338
    %2428 = vmatpush2.msra.mxu0 %v2337
    %2429 = vmatprep.subr.mxu0 %v2334
    %2430 = vmatpush2.msra.mxu0 %v2333
    %2431 = vmatprep.subr.mxu0 %v2330
    %2432 = vmatpush2.msra.mxu0 %v2329
    %2433 = vmatprep.subr.mxu0 %v2326
    %2434 = vmatpush2.msra.mxu0 %v2325
    %2435 = vmatprep.subr.mxu0 %v2322
    %2436 = vmatpush2.msra.mxu0 %v2321
    %2437 = vmatprep.subr.mxu0 %v2318
    %2438 = vmatpush2.msra.mxu0 %v2317
    %2439 = vmatprep.subr.mxu0 %v2314
    %2440 = vmatpush2.msra.mxu0 %v2313
    %2441 = vmatprep.mubr.f32.mxu0 %v2183
    %2442 = vmatmul.mubr.f32.gmra.mxu0 %v2182
    %v2443 = vpop.f32.mrf.mxu0
    %v2444 = vadd.f32 0.0, %v2443
    %v2445 = vpop.f32.mrf.mxu0
    %v2446 = vadd.f32 0.0, %v2445
    %2447 = vdwg.mxu0
    %2448 = vmatprep.subr.mxu0 %v2312
    %2449 = vmatpush1.msra.mxu0 %v2311
    %2450 = vmatprep.subr.mxu0 %v2308
    %2451 = vmatpush1.msra.mxu0 %v2307
    %2452 = vmatprep.subr.mxu0 %v2304
    %2453 = vmatpush1.msra.mxu0 %v2303
    %2454 = vmatprep.subr.mxu0 %v2300
    %2455 = vmatpush1.msra.mxu0 %v2299
    %2456 = vmatprep.subr.mxu0 %v2296
    %2457 = vmatpush1.msra.mxu0 %v2295
    %2458 = vmatprep.subr.mxu0 %v2292
    %2459 = vmatpush1.msra.mxu0 %v2291
    %2460 = vmatprep.subr.mxu0 %v2288
    %2461 = vmatpush1.msra.mxu0 %v2287
    %2462 = vmatprep.subr.mxu0 %v2284
    %2463 = vmatpush1.msra.mxu0 %v2283
    %2464 = vmatprep.subr.mxu0 %v2280
    %2465 = vmatpush1.msra.mxu0 %v2279
    %2466 = vmatprep.subr.mxu0 %v2276
    %2467 = vmatpush1.msra.mxu0 %v2275
    %2468 = vmatprep.subr.mxu0 %v2272
    %2469 = vmatpush1.msra.mxu0 %v2271
    %2470 = vmatprep.subr.mxu0 %v2268
    %2471 = vmatpush1.msra.mxu0 %v2267
    %2472 = vmatprep.subr.mxu0 %v2264
    %2473 = vmatpush1.msra.mxu0 %v2263
    %2474 = vmatprep.subr.mxu0 %v2260
    %2475 = vmatpush1.msra.mxu0 %v2259
    %2476 = vmatprep.subr.mxu0 %v2256
    %2477 = vmatpush1.msra.mxu0 %v2255
    %2478 = vmatprep.subr.mxu0 %v2252
    %2479 = vmatpush1.msra.mxu0 %v2251
    %2480 = vmatprep.subr.mxu0 %v2376
    %2481 = vmatpush2.msra.mxu0 %v2375
    %2482 = vmatprep.subr.mxu0 %v2372
    %2483 = vmatpush2.msra.mxu0 %v2371
    %2484 = vmatprep.subr.mxu0 %v2368
    %2485 = vmatpush2.msra.mxu0 %v2367
    %2486 = vmatprep.subr.mxu0 %v2364
    %2487 = vmatpush2.msra.mxu0 %v2363
    %2488 = vmatprep.subr.mxu0 %v2360
    %2489 = vmatpush2.msra.mxu0 %v2359
    %2490 = vmatprep.subr.mxu0 %v2356
    %2491 = vmatpush2.msra.mxu0 %v2355
    %2492 = vmatprep.subr.mxu0 %v2352
    %2493 = vmatpush2.msra.mxu0 %v2351
    %2494 = vmatprep.subr.mxu0 %v2348
    %2495 = vmatpush2.msra.mxu0 %v2347
    %2496 = vmatprep.subr.mxu0 %v2344
    %2497 = vmatpush2.msra.mxu0 %v2343
    %2498 = vmatprep.subr.mxu0 %v2340
    %2499 = vmatpush2.msra.mxu0 %v2339
    %2500 = vmatprep.subr.mxu0 %v2336
    %2501 = vmatpush2.msra.mxu0 %v2335
    %2502 = vmatprep.subr.mxu0 %v2332
    %2503 = vmatpush2.msra.mxu0 %v2331
    %2504 = vmatprep.subr.mxu0 %v2328
    %2505 = vmatpush2.msra.mxu0 %v2327
    %2506 = vmatprep.subr.mxu0 %v2324
    %2507 = vmatpush2.msra.mxu0 %v2323
    %2508 = vmatprep.subr.mxu0 %v2320
    %2509 = vmatpush2.msra.mxu0 %v2319
    %2510 = vmatprep.subr.mxu0 %v2316
    %2511 = vmatpush2.msra.mxu0 %v2315
    %2512 = vmatprep.mubr.f32.mxu0 %v2183
    %2513 = vmatmul.mubr.f32.gmra.mxu0 %v2182
    %v2514 = vpop.f32.mrf.mxu0
    %v2515 = vadd.f32 0.0, %v2514
    %v2516 = vpop.f32.mrf.mxu0
    %v2517 = vadd.f32 0.0, %v2516
    %2518 = vdwg.mxu0
    %v2521 = vrot.slane %v2515, 2
    %v2522 = vrot.slane %v2517, 2
    %v2525 = vsub.f32 %v2444, %v2521
    %v2526 = vsub.f32 %v2446, %v2522
    %v2529 = vrot.slane %v2444, 2
    %v2530 = vrot.slane %v2446, 2
    %v2533 = vadd.f32 %v2515, %v2529
    %v2534 = vadd.f32 %v2517, %v2530
    %v2537 = vrot.slane %v2533, 6
    %v2538 = vrot.slane %v2534, 6
    %v2541 = vsel %vm386, %v2525, %v2537
    %v2542 = vsel %vm386, %v2526, %v2538
    %v2543 = vmul.f32 %v2541, %v2541
    %v2544 = vmul.f32 %v2542, %v2542
    %v2547 = vrot.slane %v2543, 2
    %v2548 = vrot.slane %v2544, 2
    %v2551 = vadd.f32 %v2543, %v2547
    %v2552 = vadd.f32 %v2544, %v2548
    %v2555 = vcombine.low %v2551, %v2552
    %v2557 = vunpack.c.l.s4 1983009808
    %v2558 = vunpack.c.0.s8 %v2557
    %v2559 = vlaneseq
    %v2560 = vshrl.u32 %v2559, 7
    %v2561 = vsub.s32 %v2558, %v2560
    %v2562 = vrot.slane %v2555, %v2561
    %2564 = vst [vmem:[#allocation5] sm:$0xf] %v2562
    // Predicated region
    $region14: #{qcbm_forward.1} parent=1 // pred_check
      _
    $region15: #{qcbm_forward.1} parent=1 // pred_check_branch
      %2566 = sbr.rel (0) target = $region17
    $region16: #{qcbm_forward.1} parent=1 // pred_region
      %s2568 = ssub.s32 64, 64
      %2569 = vsyncadd [#allocation4], %s2568
      %s2571 = sshll.u32 [#allocation5], 4
      %s2572 = int_to_ptr.vmem [resolvable:$true] %s2571
      %2574 = dma.vmem_to_hbm [thread:$0]  %s2572, 64, %s2, [#allocation4]
    $region17: #{qcbm_forward.1} parent=1 // pred_fallthru
      _
    // Predicated region
    $region18: #{qcbm_forward.1} parent=1 // pred_check
      _
    $region19: #{qcbm_forward.1} parent=1 // pred_check_branch
      %2576 = sbr.rel (0) target = $region21
    $region20: #{qcbm_forward.1} parent=1 // pred_region
      %2577 = dma.done [#allocation4], 64
    $region21: #{qcbm_forward.1} parent=1 // pred_fallthru
      _
    %2578 = vsyncpa [#allocation3], 1
    %2579 = vsyncpa [#allocation4], 1

</llo_original>
